<compile_context>
chip_gen: v6e
topology: v6e:2x2x1
jax: 0.10.0
libtpu: 0.0.40
codegen_flags: <defaults>
</compile_context>

<pallas_src>
import functools

import jax
import jax.numpy as jnp
from jax.experimental import pallas as pl
from jax.experimental.pallas import tpu as pltpu


# ----------------------------------------------------------------------------
# Fused matmul (conv / linear hot path)
# ----------------------------------------------------------------------------

def _matmul_kernel(*refs, epilogue, has_pre, has_aff2, has_res):
    """acc += relu?(A*ps+pt) @ B over the K grid axis; fused epilogue on last K."""
    i = 0
    a_ref, b_ref = refs[i], refs[i + 1]; i += 2
    if has_pre:
        ps_ref, pt_ref = refs[i], refs[i + 1]; i += 2
    s_ref, t_ref = refs[i], refs[i + 1]; i += 2
    if has_aff2:
        s2_ref, t2_ref = refs[i], refs[i + 1]; i += 2
    if has_res:
        r_ref = refs[i]; i += 1
    o_ref, acc_ref = refs[i], refs[i + 1]

    @pl.when(pl.program_id(2) == 0)
    def _init():
        acc_ref[...] = jnp.zeros_like(acc_ref)

    a = a_ref[...]
    if has_pre:  # fused pre-activation BatchNorm + ReLU (per input channel)
        a = jnp.maximum(a.astype(jnp.float32) * ps_ref[...] + pt_ref[...], 0.0)
        a = a.astype(jnp.bfloat16)
    acc_ref[...] += jnp.dot(a, b_ref[...], preferred_element_type=jnp.float32)

    @pl.when(pl.program_id(2) == pl.num_programs(2) - 1)
    def _finalize():
        y = acc_ref[...] * s_ref[...] + t_ref[...]
        if epilogue == "relu":
            y = jnp.maximum(y, 0.0)
        elif epilogue == "relu2":                       # BN+ReLU twice (conv1+mpool1)
            y = jnp.maximum(y, 0.0)
            y = jnp.maximum(y * s2_ref[...] + t2_ref[...], 0.0)
        elif epilogue == "sigmoid":
            y = pl.reciprocal(1.0 + jnp.exp(-y), approx=True)
        elif epilogue == "add":
            y = y + r_ref[...].astype(jnp.float32)
        elif epilogue == "mask":
            y = (1.0 + pl.reciprocal(1.0 + jnp.exp(-y), approx=True)) \
                * r_ref[...].astype(jnp.float32)
        o_ref[...] = y.astype(o_ref.dtype)


@functools.partial(jax.jit, static_argnames=("epilogue", "out_dtype"))
def fused_matmul(a, b, scale, shift, scale2=None, shift2=None, residual=None,
                 in_scale=None, in_shift=None, *, epilogue="none",
                 out_dtype=jnp.bfloat16):
    """(M,K)@(K,N) on the MXU (bf16 in, f32 acc), fused prologue/epilogue.

    prologue (in_scale/in_shift): a := relu(a*in_scale + in_shift) per K column.
    epilogue: "none"    -> y = acc*scale + shift          (also covers bias add)
              "relu"    -> relu(acc*scale + shift)        (BN+ReLU fusion)
              "relu2"   -> relu(relu(acc*s+t)*s2 + t2)    (two fused BN+ReLU)
              "sigmoid" -> sigmoid(acc*scale + shift)
              "add"     -> acc*scale + shift + residual   (residual add fusion)
              "mask"    -> (1 + sigmoid(acc*scale+shift)) * residual
    """
    M, K = a.shape
    _, N = b.shape
    a = a.astype(jnp.bfloat16)
    b = b.astype(jnp.bfloat16)

    # K tiling with NO zero-padding: pick TK as an exact divisor of K that is a
    # multiple of 128 (or K itself when it is small enough).
    TK_MAX = 1024
    if K <= TK_MAX:
        TK = K
    else:
        TK = 0
        for cand in range(TK_MAX, 127, -128):
            if K % cand == 0:
                TK = cand
                break
        if TK == 0:
            # fallback (unused for this model's shapes): zero-pad K, exact result.
            TK = 512
            pad = (-K) % TK
            a = jnp.pad(a, ((0, 0), (0, pad)))
            b = jnp.pad(b, ((0, pad), (0, 0)))
            if in_scale is not None:
                in_scale = jnp.pad(in_scale, ((0, 0), (0, pad)))
                in_shift = jnp.pad(in_shift, ((0, 0), (0, pad)))
            K += pad

    TM = min(M, 512)
    TN = min(N, 512)
    grid = (pl.cdiv(M, TM), pl.cdiv(N, TN), K // TK)

    has_pre = in_scale is not None
    has_aff2 = scale2 is not None
    has_res = residual is not None
    assert (epilogue != "relu2") or has_aff2
    assert (epilogue not in ("add", "mask")) or has_res

    in_specs = [
        pl.BlockSpec((TM, TK), lambda i, j, k: (i, k)),
        pl.BlockSpec((TK, TN), lambda i, j, k: (k, j)),
    ]
    args = [a, b]
    if has_pre:
        in_specs += [pl.BlockSpec((1, TK), lambda i, j, k: (0, k))] * 2
        args += [in_scale, in_shift]
    in_specs += [pl.BlockSpec((1, TN), lambda i, j, k: (0, j))] * 2
    args += [scale, shift]
    if has_aff2:
        in_specs += [pl.BlockSpec((1, TN), lambda i, j, k: (0, j))] * 2
        args += [scale2, shift2]
    if has_res:
        in_specs.append(pl.BlockSpec((TM, TN), lambda i, j, k: (i, j)))
        args.append(residual.astype(jnp.bfloat16))

    kern = functools.partial(_matmul_kernel, epilogue=epilogue, has_pre=has_pre,
                             has_aff2=has_aff2, has_res=has_res)
    return pl.pallas_call(
        kern,
        out_shape=jax.ShapeDtypeStruct((M, N), out_dtype),
        grid=grid,
        in_specs=in_specs,
        out_specs=pl.BlockSpec((TM, TN), lambda i, j, k: (i, j)),
        scratch_shapes=[pltpu.VMEM((TM, TN), jnp.float32)],
        compiler_params=pltpu.CompilerParams(
            dimension_semantics=("parallel", "parallel", "arbitrary"),
            vmem_limit_bytes=48 * 1024 * 1024),
    )(*args)


# ----------------------------------------------------------------------------
# Elementwise / reduction Pallas kernels
# ----------------------------------------------------------------------------

def _add_kernel(a_ref, b_ref, o_ref):
    o_ref[...] = (a_ref[...].astype(jnp.float32)
                  + b_ref[...].astype(jnp.float32)).astype(o_ref.dtype)


@jax.jit
def pallas_add(a, b):
    M, C = a.shape
    TM = min(M, 512)
    spec = pl.BlockSpec((TM, C), lambda i: (i, 0))
    return pl.pallas_call(
        _add_kernel,
        out_shape=jax.ShapeDtypeStruct((M, C), jnp.bfloat16),
        grid=(pl.cdiv(M, TM),),
        in_specs=[spec, spec],
        out_specs=spec,
        compiler_params=pltpu.CompilerParams(dimension_semantics=("parallel",)),
    )(a, b)


def _max9_kernel(*refs):
    o_ref = refs[-1]
    m = refs[0][...]
    for r in refs[1:-1]:
        m = jnp.maximum(m, r[...])
    o_ref[...] = m


@jax.jit
def pallas_max9(*slices):
    """Elementwise max of 9 equally-shaped (M, C) bf16 slices, tiled over M."""
    M, C = slices[0].shape
    TM = min(M, 256)
    spec = pl.BlockSpec((TM, C), lambda i: (i, 0))
    return pl.pallas_call(
        _max9_kernel,
        out_shape=jax.ShapeDtypeStruct((M, C), jnp.bfloat16),
        grid=(pl.cdiv(M, TM),),
        in_specs=[spec] * 9,
        out_specs=spec,
        compiler_params=pltpu.CompilerParams(dimension_semantics=("parallel",)),
    )(*slices)


def _gap_kernel(x_ref, s_ref, t_ref, o_ref):
    y = jnp.maximum(x_ref[...].astype(jnp.float32) * s_ref[...] + t_ref[...], 0.0)
    o_ref[...] = jnp.mean(y, axis=1)


@jax.jit
def pallas_bn_relu_gap(x, scale, shift):
    """(N, HW, C) -> (N, C): mean over spatial of relu(x*scale + shift)."""
    N, HW, C = x.shape
    TC = min(C, 512)
    return pl.pallas_call(
        _gap_kernel,
        out_shape=jax.ShapeDtypeStruct((N, C), jnp.float32),
        grid=(pl.cdiv(C, TC),),
        in_specs=[pl.BlockSpec((N, HW, TC), lambda i: (0, 0, i)),
                  pl.BlockSpec((1, 1, TC), lambda i: (0, 0, i)),
                  pl.BlockSpec((1, 1, TC), lambda i: (0, 0, i))],
        out_specs=pl.BlockSpec((N, TC), lambda i: (0, i)),
        compiler_params=pltpu.CompilerParams(dimension_semantics=("parallel",)),
    )(x, scale.reshape(1, 1, -1), shift.reshape(1, 1, -1))


# ----------------------------------------------------------------------------
# Glue ops built on the Pallas kernels
# ----------------------------------------------------------------------------

def conv2d(x, w_hwio, stride=1, padding=0, scale=None, shift=None,
           scale2=None, shift2=None, residual=None, in_scale=None,
           in_shift=None, epilogue="none"):
    """NHWC conv (HWIO bf16 weights, no bias) lowered to one fused Pallas matmul."""
    N, H, W, C = x.shape
    kh, kw, I, O = w_hwio.shape
    Ho = (H + 2 * padding - kh) // stride + 1
    Wo = (W + 2 * padding - kw) // stride + 1

    xb = x.astype(jnp.bfloat16)
    if padding > 0:
        xb = jnp.pad(xb, ((0, 0), (padding, padding), (padding, padding), (0, 0)))
    if kh == 1 and kw == 1:
        a = xb[:, ::stride, ::stride, :][:, :Ho, :Wo, :].reshape(N * Ho * Wo, C)
    else:
        # TODO(synk): the im2col patch matrix (pad + shifted slices + concat) is
        # still materialized by XLA; fully in-kernel tap accumulation would need
        # element-offset index maps / manual halo DMA.
        cols = []
        for di in range(kh):
            for dj in range(kw):
                cols.append(xb[:, di:di + stride * (Ho - 1) + 1:stride,
                               dj:dj + stride * (Wo - 1) + 1:stride, :])
        a = jnp.concatenate(cols, axis=-1).reshape(N * Ho * Wo, kh * kw * C)
        if in_scale is not None:
            in_scale = jnp.tile(in_scale, (1, kh * kw))
            in_shift = jnp.tile(in_shift, (1, kh * kw))

    wmat = w_hwio.reshape(kh * kw * I, O)
    if scale is None:
        scale = jnp.ones((1, O), jnp.float32)
        shift = jnp.zeros((1, O), jnp.float32)
    res2 = None if residual is None else residual.reshape(N * Ho * Wo, O)
    out = fused_matmul(a, wmat, scale, shift, scale2, shift2, res2,
                       in_scale, in_shift, epilogue=epilogue)
    return out.reshape(N, Ho, Wo, O)


def add4d(a, b):
    N, H, W, C = a.shape
    return pallas_add(a.reshape(-1, C), b.reshape(-1, C)).reshape(N, H, W, C)


def maxpool_3x3_s2(x):
    """nn.MaxPool2d(kernel_size=3, stride=2, padding=1), bf16."""
    # TODO(synk): a single-input fused window kernel would avoid materializing
    # the 9 shifted slices; it needs halo-overlapping blocks (manual DMA).
    N, H, W, C = x.shape
    neg = float(jnp.finfo(jnp.bfloat16).min)
    xp = jnp.pad(x.astype(jnp.bfloat16), ((0, 0), (1, 1), (1, 1), (0, 0)),
                 constant_values=neg)
    Ho = (H + 2 - 3) // 2 + 1
    Wo = (W + 2 - 3) // 2 + 1
    slices = []
    for di in range(3):
        for dj in range(3):
            s = xp[:, di:di + 2 * (Ho - 1) + 1:2, dj:dj + 2 * (Wo - 1) + 1:2, :]
            slices.append(s.reshape(N * Ho * Wo, C))
    return pallas_max9(*slices).reshape(N, Ho, Wo, C)


def upsample_bilinear(x, out_h, out_w):
    """nn.UpsamplingBilinear2d (align_corners=True), bf16."""
    # TODO(synk): the bilinear index-gather stays in XLA glue (static indices
    # and weights; arithmetic is trivial).
    N, H, W, C = x.shape

    def coords(in_s, out_s):
        if out_s == 1:
            src = jnp.zeros((1,), jnp.float32)
        else:
            src = jnp.arange(out_s, dtype=jnp.float32) * ((in_s - 1) / (out_s - 1))
        i0 = jnp.clip(jnp.floor(src).astype(jnp.int32), 0, in_s - 1)
        i1 = jnp.minimum(i0 + 1, in_s - 1)
        frac = src - i0.astype(jnp.float32)
        return i0, i1, frac.astype(jnp.bfloat16), (1.0 - frac).astype(jnp.bfloat16)

    y0, y1, wy1, wy0 = coords(H, out_h)
    x0, x1, wx1, wx0 = coords(W, out_w)
    xb = x.astype(jnp.bfloat16)
    top = jnp.take(xb, y0, axis=1)
    bot = jnp.take(xb, y1, axis=1)
    rows = top * wy0[None, :, None, None] + bot * wy1[None, :, None, None]
    left = jnp.take(rows, x0, axis=2)
    right = jnp.take(rows, x1, axis=2)
    return left * wx0[None, None, :, None] + right * wx1[None, None, :, None]


def upsample_like(x, ref):
    return upsample_bilinear(x, ref.shape[1], ref.shape[2])


# ----------------------------------------------------------------------------
# Parameter construction (deterministic, synthetic)
# ----------------------------------------------------------------------------

class KeyGen:
    def __init__(self, key):
        self._key = key

    def __call__(self):
        self._key, sub = jax.random.split(self._key)
        return sub


def conv_init(kg, out_c, in_c, kh, kw):
    fan_in = in_c * kh * kw
    std = 0.5 / (fan_in ** 0.5)
    w = std * jax.random.normal(kg(), (kh, kw, in_c, out_c), jnp.float32)
    return w.astype(jnp.bfloat16)          # bf16 weights feed the MXU directly


def bn_init(kg, c):
    # eval-mode BatchNorm folded into scale/shift (synthetic running stats)
    gamma = 1.0 + 0.1 * jax.random.normal(kg(), (c,), jnp.float32)
    beta = 0.05 * jax.random.normal(kg(), (c,), jnp.float32)
    mean = 0.05 * jax.random.normal(kg(), (c,), jnp.float32)
    var = jnp.ones((c,), jnp.float32)
    eps = 1e-5
    scale = gamma / jnp.sqrt(var + eps)
    shift = beta - mean * scale
    return scale.reshape(1, c), shift.reshape(1, c)


def make_residual_block(kg, in_c, out_c, stride=1):
    mid = out_c // 4
    p = {
        "bn1": bn_init(kg, in_c),
        "conv1": conv_init(kg, mid, in_c, 1, 1),
        "bn2": bn_init(kg, mid),
        "conv2": conv_init(kg, mid, mid, 3, 3),
        "bn3": bn_init(kg, mid),
        "conv3": conv_init(kg, out_c, mid, 1, 1),
        "stride": stride,
    }
    if in_c != out_c or stride != 1:
        p["conv4"] = conv_init(kg, out_c, in_c, 1, 1)
    return p


def residual_block(p, x):
    # Pre-activation bn1+ReLU is fused as a prologue into conv1 / conv4 (no
    # standalone feature-map round trip); bn2/bn3+ReLU are fused epilogues.
    bn1_s, bn1_t = p["bn1"]
    if "conv4" in p:
        residual = conv2d(x, p["conv4"], stride=p["stride"], padding=0,
                          in_scale=bn1_s, in_shift=bn1_t)
    else:
        residual = x
    out = conv2d(x, p["conv1"], 1, 0, scale=p["bn2"][0], shift=p["bn2"][1],
                 epilogue="relu", in_scale=bn1_s, in_shift=bn1_t)
    out = conv2d(out, p["conv2"], p["stride"], 1,
                 scale=p["bn3"][0], shift=p["bn3"][1], epilogue="relu")
    out = conv2d(out, p["conv3"], 1, 0, epilogue="add", residual=residual)
    return out


def make_mask_head(kg, c):
    return {
        "bn1": bn_init(kg, c),
        "conv1": conv_init(kg, c, c, 1, 1),
        "bn2": bn_init(kg, c),
        "conv2": conv_init(kg, c, c, 1, 1),
    }


def mask_head(p, x, trunk):
    """BN-ReLU-Conv-BN-ReLU-Conv-Sigmoid, then (1 + mask) * trunk, all fused."""
    out = conv2d(x, p["conv1"], 1, 0, scale=p["bn2"][0], shift=p["bn2"][1],
                 epilogue="relu", in_scale=p["bn1"][0], in_shift=p["bn1"][1])
    out = conv2d(out, p["conv2"], 1, 0, epilogue="mask", residual=trunk)
    return out


# ----------------------------------------------------------------------------
# Attention modules (stage 0..3)
# ----------------------------------------------------------------------------

def make_attn_stage0(kg, in_c, out_c):
    return {
        "first": make_residual_block(kg, in_c, out_c),
        "trunk0": make_residual_block(kg, in_c, out_c),
        "trunk1": make_residual_block(kg, out_c, out_c),
        "sm1": make_residual_block(kg, in_c, out_c),
        "skip1": make_residual_block(kg, in_c, out_c),
        "sm2": make_residual_block(kg, in_c, out_c),
        "skip2": make_residual_block(kg, in_c, out_c),
        "sm3": make_residual_block(kg, in_c, out_c),
        "skip3": make_residual_block(kg, in_c, out_c),
        "sm4a": make_residual_block(kg, in_c, out_c),
        "sm4b": make_residual_block(kg, out_c, out_c),
        "sm5": make_residual_block(kg, in_c, out_c),
        "sm6": make_residual_block(kg, in_c, out_c),
        "sm7": make_residual_block(kg, in_c, out_c),
        "head": make_mask_head(kg, out_c),
        "last": make_residual_block(kg, in_c, out_c),
    }


def attn_stage0(p, x):
    x = residual_block(p["first"], x)
    out_trunk = residual_block(p["trunk1"], residual_block(p["trunk0"], x))
    out_mpool1 = maxpool_3x3_s2(x)
    out_sm1 = residual_block(p["sm1"], out_mpool1)
    out_skip1 = residual_block(p["skip1"], out_sm1)
    out_mpool2 = maxpool_3x3_s2(out_sm1)
    out_sm2 = residual_block(p["sm2"], out_mpool2)
    out_skip2 = residual_block(p["skip2"], out_sm2)
    out_mpool3 = maxpool_3x3_s2(out_sm2)
    out_sm3 = residual_block(p["sm3"], out_mpool3)
    out_skip3 = residual_block(p["skip3"], out_sm3)
    out_mpool4 = maxpool_3x3_s2(out_sm3)
    out_sm4 = residual_block(p["sm4b"], residual_block(p["sm4a"], out_mpool4))
    out_interp4 = add4d(upsample_like(out_sm4, out_sm3), out_sm3)
    out = add4d(out_interp4, out_skip3)
    out_sm5 = residual_block(p["sm5"], out)
    out_interp3 = add4d(upsample_like(out_sm5, out_sm2), out_sm2)
    out = add4d(out_interp3, out_skip2)
    out_sm6 = residual_block(p["sm6"], out)
    out_interp2 = add4d(upsample_like(out_sm6, out_sm1), out_sm1)
    out = add4d(out_interp2, out_skip1)
    out_sm7 = residual_block(p["sm7"], out)
    out_interp1 = add4d(upsample_like(out_sm7, out_trunk), out_trunk)
    out = mask_head(p["head"], out_interp1, out_trunk)
    return residual_block(p["last"], out)


def make_attn_stage1(kg, in_c, out_c):
    return {
        "first": make_residual_block(kg, in_c, out_c),
        "trunk0": make_residual_block(kg, in_c, out_c),
        "trunk1": make_residual_block(kg, out_c, out_c),
        "sm1": make_residual_block(kg, in_c, out_c),
        "skip1": make_residual_block(kg, in_c, out_c),
        "sm2": make_residual_block(kg, in_c, out_c),
        "skip2": make_residual_block(kg, in_c, out_c),
        "sm3a": make_residual_block(kg, in_c, out_c),
        "sm3b": make_residual_block(kg, out_c, out_c),
        "sm4": make_residual_block(kg, in_c, out_c),
        "sm5": make_residual_block(kg, in_c, out_c),
        "head": make_mask_head(kg, out_c),
        "last": make_residual_block(kg, in_c, out_c),
    }


def attn_stage1(p, x):
    x = residual_block(p["first"], x)
    out_trunk = residual_block(p["trunk1"], residual_block(p["trunk0"], x))
    out_mpool1 = maxpool_3x3_s2(x)
    out_sm1 = residual_block(p["sm1"], out_mpool1)
    out_skip1 = residual_block(p["skip1"], out_sm1)
    out_mpool2 = maxpool_3x3_s2(out_sm1)
    out_sm2 = residual_block(p["sm2"], out_mpool2)
    out_skip2 = residual_block(p["skip2"], out_sm2)
    out_mpool3 = maxpool_3x3_s2(out_sm2)
    out_sm3 = residual_block(p["sm3b"], residual_block(p["sm3a"], out_mpool3))
    out_interp3 = add4d(upsample_like(out_sm3, out_sm2), out_sm2)
    out = add4d(out_interp3, out_skip2)
    out_sm4 = residual_block(p["sm4"], out)
    out_interp2 = add4d(upsample_like(out_sm4, out_sm1), out_sm1)
    out = add4d(out_interp2, out_skip1)
    out_sm5 = residual_block(p["sm5"], out)
    out_interp1 = add4d(upsample_like(out_sm5, out_trunk), out_trunk)
    out = mask_head(p["head"], out_interp1, out_trunk)
    return residual_block(p["last"], out)


def make_attn_stage2(kg, in_c, out_c):
    return {
        "first": make_residual_block(kg, in_c, out_c),
        "trunk0": make_residual_block(kg, in_c, out_c),
        "trunk1": make_residual_block(kg, out_c, out_c),
        "sm1": make_residual_block(kg, in_c, out_c),
        "skip1": make_residual_block(kg, in_c, out_c),
        "sm2a": make_residual_block(kg, in_c, out_c),
        "sm2b": make_residual_block(kg, out_c, out_c),
        "sm3": make_residual_block(kg, in_c, out_c),
        "head": make_mask_head(kg, out_c),
        "last": make_residual_block(kg, in_c, out_c),
    }


def attn_stage2(p, x):
    x = residual_block(p["first"], x)
    out_trunk = residual_block(p["trunk1"], residual_block(p["trunk0"], x))
    out_mpool1 = maxpool_3x3_s2(x)
    out_sm1 = residual_block(p["sm1"], out_mpool1)
    out_skip1 = residual_block(p["skip1"], out_sm1)
    out_mpool2 = maxpool_3x3_s2(out_sm1)
    out_sm2 = residual_block(p["sm2b"], residual_block(p["sm2a"], out_mpool2))
    out_interp2 = add4d(upsample_like(out_sm2, out_sm1), out_sm1)
    out = add4d(out_interp2, out_skip1)
    out_sm3 = residual_block(p["sm3"], out)
    out_interp1 = add4d(upsample_like(out_sm3, out_trunk), out_trunk)
    out = mask_head(p["head"], out_interp1, out_trunk)
    return residual_block(p["last"], out)


def make_attn_stage3(kg, in_c, out_c):
    return {
        "first": make_residual_block(kg, in_c, out_c),
        "trunk0": make_residual_block(kg, in_c, out_c),
        "trunk1": make_residual_block(kg, out_c, out_c),
        "sm1a": make_residual_block(kg, in_c, out_c),
        "sm1b": make_residual_block(kg, out_c, out_c),
        "head": make_mask_head(kg, out_c),
        "last": make_residual_block(kg, in_c, out_c),
    }


def attn_stage3(p, x):
    x = residual_block(p["first"], x)
    out_trunk = residual_block(p["trunk1"], residual_block(p["trunk0"], x))
    out_mpool1 = maxpool_3x3_s2(x)
    out_sm1 = residual_block(p["sm1b"], residual_block(p["sm1a"], out_mpool1))
    out_interp1 = add4d(upsample_like(out_sm1, out_trunk), out_trunk)
    out = mask_head(p["head"], out_interp1, out_trunk)
    return residual_block(p["last"], out)


# ----------------------------------------------------------------------------
# Full model
# ----------------------------------------------------------------------------

def build_params(key, num_classes=10, width_div=8):
    kg = KeyGen(key)
    ch = lambda n: max(n // width_div, 4)
    c64, c128, c256, c512, c1024, c2048 = (
        ch(64), ch(128), ch(256), ch(512), ch(1024), ch(2048))
    P = {}
    P["conv1"] = conv_init(kg, c64, 1, 7, 7)
    P["conv1_bn"] = bn_init(kg, c64)
    P["mpool1_bn"] = bn_init(kg, c64)   # mpool1 = BN+ReLU+AdaptiveMaxPool2d((None,None)) == identity pool
    P["rb0"] = make_residual_block(kg, c64, c128)
    P["attn0"] = make_attn_stage0(kg, c128, c128)
    P["rb1"] = make_residual_block(kg, c128, c256, 2)
    P["attn1"] = make_attn_stage1(kg, c256, c256)
    P["rb2"] = make_residual_block(kg, c256, c512, 2)
    P["attn2"] = make_attn_stage2(kg, c512, c512)
    P["attn2_2"] = make_attn_stage2(kg, c512, c512)
    P["rb3"] = make_residual_block(kg, c512, c1024, 2)
    P["attn3"] = make_attn_stage3(kg, c1024, c1024)
    P["attn3_2"] = make_attn_stage3(kg, c1024, c1024)
    P["attn3_3"] = make_attn_stage3(kg, c1024, c1024)
    P["rb4"] = make_residual_block(kg, c1024, c2048, 2)
    P["rb5"] = make_residual_block(kg, c2048, c2048)
    P["rb6"] = make_residual_block(kg, c2048, c2048)
    P["mpool2_bn"] = bn_init(kg, c2048)
    # FC weights padded to a lane-dense (128-wide) output; sliced back after.
    npad = max(128, ((num_classes + 127) // 128) * 128)
    fc_w = 0.1 * jax.random.normal(kg(), (c2048, num_classes), jnp.float32)
    fc_b = 0.01 * jax.random.normal(kg(), (1, num_classes), jnp.float32)
    P["fc_w"] = jnp.pad(fc_w, ((0, 0), (0, npad - num_classes))).astype(jnp.bfloat16)
    P["fc_b"] = jnp.pad(fc_b, ((0, 0), (0, npad - num_classes)))
    P["fc_ones"] = jnp.ones((1, npad), jnp.float32)
    P["num_classes"] = num_classes
    return P


def model_forward(P, x_nchw):
    # layout: inputs arrive NCHW (PyTorch convention) and are transposed to NHWC.
    x = jnp.transpose(x_nchw, (0, 2, 3, 1)).astype(jnp.float32)
    # conv1 with both BN+ReLU stages (conv1_bn and mpool1_bn) fused into the epilogue
    out = conv2d(x, P["conv1"], stride=2, padding=3,
                 scale=P["conv1_bn"][0], shift=P["conv1_bn"][1],
                 scale2=P["mpool1_bn"][0], shift2=P["mpool1_bn"][1],
                 epilogue="relu2")
    out = residual_block(P["rb0"], out)
    out = attn_stage0(P["attn0"], out)
    out = residual_block(P["rb1"], out)
    out = attn_stage1(P["attn1"], out)
    out = residual_block(P["rb2"], out)
    out = attn_stage2(P["attn2"], out)
    out = attn_stage2(P["attn2_2"], out)
    out = residual_block(P["rb3"], out)
    out = attn_stage3(P["attn3"], out)
    out = attn_stage3(P["attn3_2"], out)
    out = attn_stage3(P["attn3_3"], out)
    out = residual_block(P["rb4"], out)
    out = residual_block(P["rb5"], out)
    out = residual_block(P["rb6"], out)
    # mpool2 = BN + ReLU + AdaptiveAvgPool2d(1), fused into the GAP kernel
    N, H, W, C = out.shape
    pooled = pallas_bn_relu_gap(out.reshape(N, H * W, C),
                                P["mpool2_bn"][0], P["mpool2_bn"][1])
    logits = fused_matmul(pooled, P["fc_w"], P["fc_ones"], P["fc_b"],
                          epilogue="none", out_dtype=jnp.float32)
    return logits[:, :P["num_classes"]]


# ----------------------------------------------------------------------------
# Demo
# ----------------------------------------------------------------------------

if __name__ == "__main__":
    WIDTH_DIV = 8     # channel widths = original / 8  (set 1 for full-size model)
    SPATIAL = 64      # input resolution (original model uses 448)
    NUM_CLASSES = 10
    BATCH = 2

    key = jax.random.PRNGKey(0)
    pkey, xkey = jax.random.split(key)
    params = build_params(pkey, num_classes=NUM_CLASSES, width_div=WIDTH_DIV)
    x = jax.random.normal(xkey, (BATCH, 1, SPATIAL, SPATIAL), jnp.float32)  # NCHW

    logits = model_forward(params, x)
    logits = jax.block_until_ready(logits)

    assert logits.shape == (BATCH, NUM_CLASSES), logits.shape
    assert bool(jnp.all(jnp.isfinite(logits)))
    print("KERNEL_OK")
</pallas_src>

<mosaic_0001>
module attributes {stable_mosaic.version = 11 : i64} {
  func.func @_matmul_kernel(%arg0: i32, %arg1: i32, %arg2: i32, %arg3: memref<512x49xbf16, #tpu.memory_space<vmem>>, %arg4: memref<49x8xbf16, #tpu.memory_space<vmem>>, %arg5: memref<1x8xf32, #tpu.memory_space<vmem>>, %arg6: memref<1x8xf32, #tpu.memory_space<vmem>>, %arg7: memref<1x8xf32, #tpu.memory_space<vmem>>, %arg8: memref<1x8xf32, #tpu.memory_space<vmem>>, %arg9: memref<512x8xbf16, #tpu.memory_space<vmem>>, %arg10: memref<512x8xf32, #tpu.memory_space<vmem>>) attributes {dimension_semantics = [#tpu.dimension_semantics<parallel>, #tpu.dimension_semantics<parallel>, #tpu.dimension_semantics<arbitrary>], iteration_bounds = array<i64: 4, 1, 1>, scalar_prefetch = 0 : i64, scratch_operands = 1 : i64, tpu.core_type = #tpu.core_type<tc>, window_params = [{transform_indices = @transform_0, window_bounds = array<i64: 512, 49>}, {transform_indices = @transform_1, window_bounds = array<i64: 49, 8>}, {transform_indices = @transform_2, window_bounds = array<i64: 1, 8>}, {transform_indices = @transform_3, window_bounds = array<i64: 1, 8>}, {transform_indices = @transform_4, window_bounds = array<i64: 1, 8>}, {transform_indices = @transform_5, window_bounds = array<i64: 1, 8>}, {transform_indices = @transform_6, window_bounds = array<i64: 512, 8>}]} {
    %c0_i32 = arith.constant 0 : i32
    %0 = arith.cmpi eq, %arg2, %c0_i32 : i32
    %1 = arith.extui %0 : i1 to i32
    %c0_i32_0 = arith.constant 0 : i32
    %2 = arith.cmpi ne, %1, %c0_i32_0 : i32
    scf.if %2 {
      %cst_10 = arith.constant 0.000000e+00 : f32
      %12 = vector.broadcast %cst_10 : f32 to vector<512x8xf32>
      %c0_11 = arith.constant 0 : index
      %c0_12 = arith.constant 0 : index
      %13 = vector.load %arg10[%c0_11, %c0_12] : memref<512x8xf32, #tpu.memory_space<vmem>>, vector<512x8xf32>
      tpu.vector_store %arg10[%c0_11, %c0_12], %12 {strides = array<i32>} : memref<512x8xf32, #tpu.memory_space<vmem>>, vector<512x8xf32>,
    } else {
    }
    %c0 = arith.constant 0 : index
    %c0_1 = arith.constant 0 : index
    %3 = vector.load %arg3[%c0, %c0_1] : memref<512x49xbf16, #tpu.memory_space<vmem>>, vector<512x49xbf16>
    %c0_2 = arith.constant 0 : index
    %c0_3 = arith.constant 0 : index
    %4 = vector.load %arg10[%c0_2, %c0_3] : memref<512x8xf32, #tpu.memory_space<vmem>>, vector<512x8xf32>
    %c0_4 = arith.constant 0 : index
    %c0_5 = arith.constant 0 : index
    %5 = vector.load %arg4[%c0_4, %c0_5] : memref<49x8xbf16, #tpu.memory_space<vmem>>, vector<49x8xbf16>
    %cst = arith.constant dense<0.000000e+00> : vector<512x8xf32>
    %6 = tpu.matmul %3, %5, %cst {dimension_numbers = #tpu.dot_dimension_numbers<[1], [0], [0], [1], [0, 0, 1, 1], [], []>} : vector<512x49xbf16>, vector<49x8xbf16>, vector<512x8xf32> -> vector<512x8xf32>
    %7 = arith.addf %4, %6 : vector<512x8xf32>
    %c0_6 = arith.constant 0 : index
    %c0_7 = arith.constant 0 : index
    %8 = vector.load %arg10[%c0_6, %c0_7] : memref<512x8xf32, #tpu.memory_space<vmem>>, vector<512x8xf32>
    tpu.vector_store %arg10[%c0_6, %c0_7], %7 {strides = array<i32>} : memref<512x8xf32, #tpu.memory_space<vmem>>, vector<512x8xf32>,
    %c0_i32_8 = arith.constant 0 : i32
    %9 = arith.cmpi eq, %arg2, %c0_i32_8 : i32
    %10 = arith.extui %9 : i1 to i32
    %c0_i32_9 = arith.constant 0 : i32
    %11 = arith.cmpi ne, %10, %c0_i32_9 : i32
    scf.if %11 {
      %c0_10 = arith.constant 0 : index
      %c0_11 = arith.constant 0 : index
      %12 = vector.load %arg10[%c0_10, %c0_11] : memref<512x8xf32, #tpu.memory_space<vmem>>, vector<512x8xf32>
      %c0_12 = arith.constant 0 : index
      %c0_13 = arith.constant 0 : index
      %13 = vector.load %arg5[%c0_12, %c0_13] : memref<1x8xf32, #tpu.memory_space<vmem>>, vector<1x8xf32>
      %14 = vector.broadcast %13 : vector<1x8xf32> to vector<512x8xf32>
      %15 = arith.mulf %12, %14 : vector<512x8xf32>
      %c0_14 = arith.constant 0 : index
      %c0_15 = arith.constant 0 : index
      %16 = vector.load %arg6[%c0_14, %c0_15] : memref<1x8xf32, #tpu.memory_space<vmem>>, vector<1x8xf32>
      %17 = vector.broadcast %16 : vector<1x8xf32> to vector<512x8xf32>
      %18 = arith.addf %15, %17 : vector<512x8xf32>
      %cst_16 = arith.constant 0.000000e+00 : f32
      %19 = vector.broadcast %cst_16 : f32 to vector<512x8xf32>
      %20 = arith.maximumf %18, %19 : vector<512x8xf32>
      %c0_17 = arith.constant 0 : index
      %c0_18 = arith.constant 0 : index
      %21 = vector.load %arg7[%c0_17, %c0_18] : memref<1x8xf32, #tpu.memory_space<vmem>>, vector<1x8xf32>
      %22 = vector.broadcast %21 : vector<1x8xf32> to vector<512x8xf32>
      %23 = arith.mulf %20, %22 : vector<512x8xf32>
      %c0_19 = arith.constant 0 : index
      %c0_20 = arith.constant 0 : index
      %24 = vector.load %arg8[%c0_19, %c0_20] : memref<1x8xf32, #tpu.memory_space<vmem>>, vector<1x8xf32>
      %25 = vector.broadcast %24 : vector<1x8xf32> to vector<512x8xf32>
      %26 = arith.addf %23, %25 : vector<512x8xf32>
      %cst_21 = arith.constant 0.000000e+00 : f32
      %27 = vector.broadcast %cst_21 : f32 to vector<512x8xf32>
      %28 = arith.maximumf %26, %27 : vector<512x8xf32>
      %29 = arith.truncf %28 : vector<512x8xf32> to vector<512x8xbf16>
      %c0_22 = arith.constant 0 : index
      %c0_23 = arith.constant 0 : index
      %30 = vector.load %arg9[%c0_22, %c0_23] : memref<512x8xbf16, #tpu.memory_space<vmem>>, vector<512x8xbf16>
      tpu.vector_store %arg9[%c0_22, %c0_23], %29 {strides = array<i32>} : memref<512x8xbf16, #tpu.memory_space<vmem>>, vector<512x8xbf16>,
    } else {
    }
    return
  }
  func.func @transform_0(%arg0: i32, %arg1: i32, %arg2: i32) -> (i32, i32) {
    %c0_i32 = arith.constant 0 : i32
    return %arg0, %arg2 : i32, i32
  }
  func.func @transform_1(%arg0: i32, %arg1: i32, %arg2: i32) -> (i32, i32) {
    %c0_i32 = arith.constant 0 : i32
    return %arg2, %arg1 : i32, i32
  }
  func.func @transform_2(%arg0: i32, %arg1: i32, %arg2: i32) -> (i32, i32) {
    %c0_i32 = arith.constant 0 : i32
    %c0_i32_0 = arith.constant 0 : i32
    return %c0_i32, %arg1 : i32, i32
  }
  func.func @transform_3(%arg0: i32, %arg1: i32, %arg2: i32) -> (i32, i32) {
    %c0_i32 = arith.constant 0 : i32
    %c0_i32_0 = arith.constant 0 : i32
    return %c0_i32, %arg1 : i32, i32
  }
  func.func @transform_4(%arg0: i32, %arg1: i32, %arg2: i32) -> (i32, i32) {
    %c0_i32 = arith.constant 0 : i32
    %c0_i32_0 = arith.constant 0 : i32
    return %c0_i32, %arg1 : i32, i32
  }
  func.func @transform_5(%arg0: i32, %arg1: i32, %arg2: i32) -> (i32, i32) {
    %c0_i32 = arith.constant 0 : i32
    %c0_i32_0 = arith.constant 0 : i32
    return %c0_i32, %arg1 : i32, i32
  }
  func.func @transform_6(%arg0: i32, %arg1: i32, %arg2: i32) -> (i32, i32) {
    %c0_i32 = arith.constant 0 : i32
    return %arg0, %arg1 : i32, i32
  }
}

</mosaic_0001>

<llo_original>
// kernel: fused_matmul.1
$region0: #{fused_matmul.1}
  #allocation0 [shape = 'u32[]', space=smem, size = 0x4, offset = 0x4, fixed_abs, tag = 'smem constant byte address 0x4 - core index']
  #allocation1 [shape = 'u32[144,128]{1,0:T(1,128)}', space=vmem, size = 0x12000, scoped, tag = 'internal scratch']
  #allocation2 [shape = 'f32[512,8]{1,0:T(8,128)}', space=vmem, size = 0x40000, scoped, tag = 'scratch operand']
  %s0 = inlined_call_operand.vmem [shape: bf16[2048,49], index: 0, kind: input, shape index: {}]
  %s1 = inlined_call_operand.vmem [shape: bf16[49,8], index: 1, kind: input, shape index: {}]
  %s2 = inlined_call_operand.vmem [shape: f32[1,8], index: 2, kind: input, shape index: {}]
  %s3 = inlined_call_operand.vmem [shape: f32[1,8], index: 3, kind: input, shape index: {}]
  %s4 = inlined_call_operand.vmem [shape: f32[1,8], index: 4, kind: input, shape index: {}]
  %s5 = inlined_call_operand.vmem [shape: f32[1,8], index: 5, kind: input, shape index: {}]
  %s6 = inlined_call_operand.vmem [shape: bf16[2048,8], index: 6, kind: output, shape index: {}]
  %s7 = sld [smem:[#allocation0]]
  $region65: #{fused_matmul.1} parent=0
    _
  %s9 = ssub.s32 1, %s7
  %s10 = scalar_select 0, %s9, %s7
  loop: start=0, step=1, limit=6
  $region2: #{fused_matmul.1} parent=0 // loop_pre_header
    _
  $region3: #{fused_matmul.1} parent=0 // loop_header
    %s12 = sphi 0, %s16
    %p13 = scmp.ge.s32.totalorder %s12, 6
    %s19 = sphi 0, %s38
    %s20 = sphi 0, %s34
    %s21 = sphi 0, %s30
    %s22 = sphi 0, %s19
    %s23 = sphi 0, %s20
    %s24 = sphi 0, %s21
    %s25 = sphi 0, %s22
    %s26 = sphi 0, %s23
    %s27 = sphi 0, %s24
    %s43 = sphi 0, %s45
    %s46 = sphi 0, %s43
    %s47 = sphi 0, %s46
    %s63 = sphi 0, %s47
    %s71 = sphi 0, %s73
    %s74 = sphi 0, %s71
    %s75 = sphi 0, %s74
    %s91 = sphi 0, %s75
    %s97 = sphi 0, %s99
    %s100 = sphi 0, %s97
    %s101 = sphi 0, %s100
    %s117 = sphi 0, %s101
    %s123 = sphi 0, %s125
    %s126 = sphi 0, %s123
    %s127 = sphi 0, %s126
    %s143 = sphi 0, %s127
    %s149 = sphi 0, %s151
    %s152 = sphi 0, %s149
    %s153 = sphi 0, %s152
    %s169 = sphi 0, %s153
    %s175 = sphi 0, %s177
    %s178 = sphi 0, %s175
    %s179 = sphi 0, %s178
    %s195 = sphi 0, %s179
    %s203 = sphi 0, %s205
    %s206 = sphi 0, %s203
    %s207 = sphi 0, %s206
    %s223 = sphi 0, %s207
  $region4: #{fused_matmul.1} parent=0 // loop_header_branch
    %15 = sbr.rel (%p13) target = $region8
  $region5: #{fused_matmul.1} parent=0 // loop_body
    %s17 = ssub.s32 %s12, 1
    %s18 = ssub.s32 %s12, 2
    %s28 = sadd.s32 1, %s21
    %p29 = scmp.ge.s32.totalorder %s28, 1
    %s30 = scalar_select %p29, 0, %s28
    %s31 = sadd.s32 1, %s20
    %s32 = scalar_select %p29, %s31, %s20
    %p33 = scmp.ge.s32.totalorder %s32, 1
    %s34 = scalar_select %p33, 0, %s32
    %s35 = sadd.s32 1, %s19
    %s36 = scalar_select %p33, %s35, %s19
    %p37 = scmp.ge.s32.totalorder %s36, 4
    %s38 = scalar_select %p37, 0, %s36
    %s39 = ssub.s32 %s19, %s38
    %s40 = ssub.s32 %s21, %s30
    %s41 = sor.u32 %s39, %s40
    %p42 = scmp.eq.s32.totalorder %s41, 0
    %s44 = sadd.s32 %s43, 1
    %s45 = scalar_select %p42, %s43, %s44
    %p48 = pneg %p42
    %p49 = scmp.eq.s32.totalorder %s12, 3
    %p50 = por %p48, %p49
    %p51 = scmp.ne.s32.totalorder %s43, %s46
    %p52 = scmp.eq.s32.totalorder %s12, 0
    %p53 = por %p51, %p52
    %p54 = scmp.ne.s32.totalorder %s43, %s46
    %p55 = scmp.eq.s32.totalorder %s17, 3
    %p56 = por %p54, %p55
    %p57 = scmp.ne.s32.totalorder %s46, %s47
    %p58 = scmp.eq.s32.totalorder %s17, 0
    %p59 = por %p57, %p58
    %p60 = scmp.ne.s32.totalorder %s46, %s47
    %p61 = scmp.eq.s32.totalorder %s18, 3
    %p62 = por %p60, %p61
    %p64 = scmp.ne.s32.totalorder %s47, %s63
    %p65 = scmp.eq.s32.totalorder %s18, 0
    %p66 = por %p64, %p65
    %s67 = ssub.s32 %s21, %s30
    %s68 = ssub.s32 %s20, %s34
    %s69 = sor.u32 %s67, %s68
    %p70 = scmp.eq.s32.totalorder %s69, 0
    %s72 = sadd.s32 %s71, 1
    %s73 = scalar_select %p70, %s71, %s72
    %p76 = pneg %p70
    %p77 = scmp.eq.s32.totalorder %s12, 3
    %p78 = por %p76, %p77
    %p79 = scmp.ne.s32.totalorder %s71, %s74
    %p80 = scmp.eq.s32.totalorder %s12, 0
    %p81 = por %p79, %p80
    %p82 = scmp.ne.s32.totalorder %s71, %s74
    %p83 = scmp.eq.s32.totalorder %s17, 3
    %p84 = por %p82, %p83
    %p85 = scmp.ne.s32.totalorder %s74, %s75
    %p86 = scmp.eq.s32.totalorder %s17, 0
    %p87 = por %p85, %p86
    %p88 = scmp.ne.s32.totalorder %s74, %s75
    %p89 = scmp.eq.s32.totalorder %s18, 3
    %p90 = por %p88, %p89
    %p92 = scmp.ne.s32.totalorder %s75, %s91
    %p93 = scmp.eq.s32.totalorder %s18, 0
    %p94 = por %p92, %p93
    %s95 = ssub.s32 %s20, %s34
    %p96 = scmp.eq.s32.totalorder %s95, 0
    %s98 = sadd.s32 %s97, 1
    %s99 = scalar_select %p96, %s97, %s98
    %p102 = pneg %p96
    %p103 = scmp.eq.s32.totalorder %s12, 3
    %p104 = por %p102, %p103
    %p105 = scmp.ne.s32.totalorder %s97, %s100
    %p106 = scmp.eq.s32.totalorder %s12, 0
    %p107 = por %p105, %p106
    %p108 = scmp.ne.s32.totalorder %s97, %s100
    %p109 = scmp.eq.s32.totalorder %s17, 3
    %p110 = por %p108, %p109
    %p111 = scmp.ne.s32.totalorder %s100, %s101
    %p112 = scmp.eq.s32.totalorder %s17, 0
    %p113 = por %p111, %p112
    %p114 = scmp.ne.s32.totalorder %s100, %s101
    %p115 = scmp.eq.s32.totalorder %s18, 3
    %p116 = por %p114, %p115
    %p118 = scmp.ne.s32.totalorder %s101, %s117
    %p119 = scmp.eq.s32.totalorder %s18, 0
    %p120 = por %p118, %p119
    %s121 = ssub.s32 %s20, %s34
    %p122 = scmp.eq.s32.totalorder %s121, 0
    %s124 = sadd.s32 %s123, 1
    %s125 = scalar_select %p122, %s123, %s124
    %p128 = pneg %p122
    %p129 = scmp.eq.s32.totalorder %s12, 3
    %p130 = por %p128, %p129
    %p131 = scmp.ne.s32.totalorder %s123, %s126
    %p132 = scmp.eq.s32.totalorder %s12, 0
    %p133 = por %p131, %p132
    %p134 = scmp.ne.s32.totalorder %s123, %s126
    %p135 = scmp.eq.s32.totalorder %s17, 3
    %p136 = por %p134, %p135
    %p137 = scmp.ne.s32.totalorder %s126, %s127
    %p138 = scmp.eq.s32.totalorder %s17, 0
    %p139 = por %p137, %p138
    %p140 = scmp.ne.s32.totalorder %s126, %s127
    %p141 = scmp.eq.s32.totalorder %s18, 3
    %p142 = por %p140, %p141
    %p144 = scmp.ne.s32.totalorder %s127, %s143
    %p145 = scmp.eq.s32.totalorder %s18, 0
    %p146 = por %p144, %p145
    %s147 = ssub.s32 %s20, %s34
    %p148 = scmp.eq.s32.totalorder %s147, 0
    %s150 = sadd.s32 %s149, 1
    %s151 = scalar_select %p148, %s149, %s150
    %p154 = pneg %p148
    %p155 = scmp.eq.s32.totalorder %s12, 3
    %p156 = por %p154, %p155
    %p157 = scmp.ne.s32.totalorder %s149, %s152
    %p158 = scmp.eq.s32.totalorder %s12, 0
    %p159 = por %p157, %p158
    %p160 = scmp.ne.s32.totalorder %s149, %s152
    %p161 = scmp.eq.s32.totalorder %s17, 3
    %p162 = por %p160, %p161
    %p163 = scmp.ne.s32.totalorder %s152, %s153
    %p164 = scmp.eq.s32.totalorder %s17, 0
    %p165 = por %p163, %p164
    %p166 = scmp.ne.s32.totalorder %s152, %s153
    %p167 = scmp.eq.s32.totalorder %s18, 3
    %p168 = por %p166, %p167
    %p170 = scmp.ne.s32.totalorder %s153, %s169
    %p171 = scmp.eq.s32.totalorder %s18, 0
    %p172 = por %p170, %p171
    %s173 = ssub.s32 %s20, %s34
    %p174 = scmp.eq.s32.totalorder %s173, 0
    %s176 = sadd.s32 %s175, 1
    %s177 = scalar_select %p174, %s175, %s176
    %p180 = pneg %p174
    %p181 = scmp.eq.s32.totalorder %s12, 3
    %p182 = por %p180, %p181
    %p183 = scmp.ne.s32.totalorder %s175, %s178
    %p184 = scmp.eq.s32.totalorder %s12, 0
    %p185 = por %p183, %p184
    %p186 = scmp.ne.s32.totalorder %s175, %s178
    %p187 = scmp.eq.s32.totalorder %s17, 3
    %p188 = por %p186, %p187
    %p189 = scmp.ne.s32.totalorder %s178, %s179
    %p190 = scmp.eq.s32.totalorder %s17, 0
    %p191 = por %p189, %p190
    %p192 = scmp.ne.s32.totalorder %s178, %s179
    %p193 = scmp.eq.s32.totalorder %s18, 3
    %p194 = por %p192, %p193
    %p196 = scmp.ne.s32.totalorder %s179, %s195
    %p197 = scmp.eq.s32.totalorder %s18, 0
    %p198 = por %p196, %p197
    %s199 = ssub.s32 %s19, %s38
    %s200 = ssub.s32 %s20, %s34
    %s201 = sor.u32 %s199, %s200
    %p202 = scmp.eq.s32.totalorder %s201, 0
    %s204 = sadd.s32 %s203, 1
    %s205 = scalar_select %p202, %s203, %s204
    %p208 = pneg %p202
    %p209 = scmp.eq.s32.totalorder %s12, 3
    %p210 = por %p208, %p209
    %p211 = scmp.ne.s32.totalorder %s203, %s206
    %p212 = scmp.eq.s32.totalorder %s12, 0
    %p213 = por %p211, %p212
    %p214 = scmp.ne.s32.totalorder %s203, %s206
    %p215 = scmp.eq.s32.totalorder %s17, 3
    %p216 = por %p214, %p215
    %p217 = scmp.ne.s32.totalorder %s206, %s207
    %p218 = scmp.eq.s32.totalorder %s17, 0
    %p219 = por %p217, %p218
    %p220 = scmp.ne.s32.totalorder %s206, %s207
    %p221 = scmp.eq.s32.totalorder %s18, 3
    %p222 = por %p220, %p221
    %p224 = scmp.ne.s32.totalorder %s207, %s223
    %p225 = scmp.eq.s32.totalorder %s18, 0
    %p226 = por %p224, %p225
    %p227 = scmp.le.s32.totalorder 1, %s12
    %p228 = scmp.lt.s32.totalorder %s12, 5
    %p229 = pnand %p227, %p228
    %p230 = pneg %p229
    // Predicated region
    $region9: #{fused_matmul.1} parent=5 // pred_check
      _
    $region10: #{fused_matmul.1} parent=5 // pred_check_branch
      %232 = sbr.rel (%p229) target = $region12
    $region11: #{fused_matmul.1} parent=5 // pred_region
      %s233 = ssub.s32 %s12, 1
      // Predicated region
      $region13: #{fused_matmul.1} parent=11 // pred_check
        %p234 = pneg %p87
      $region14: #{fused_matmul.1} parent=11 // pred_check_branch
        %236 = sbr.rel (%p234) target = $region16
      $region15: #{fused_matmul.1} parent=11 // pred_region
        %s237 = smul.u32 7, %s24
        %p238 = scmp.lt.s32.totalorder %s237, 6
        %s239 = scalar_select %p238, %s237, 6
        %p240 = scmp.lt.s32.totalorder %s23, 0
        %s241 = scalar_select %p240, %s23, 0
        %s242 = sadd.s32 %s241, %s239
        %s243 = smul.addr %s242, 4
        %s244 = scalar_lea.vmem %s1, %s243
        %s245 = smul.u32 7, %s24
      $region16: #{fused_matmul.1} parent=11 // pred_fallthru
        _
      // Predicated region
      $region17: #{fused_matmul.1} parent=11 // pred_check
        %p246 = pneg %p113
      $region18: #{fused_matmul.1} parent=11 // pred_check_branch
        %248 = sbr.rel (%p246) target = $region20
      $region19: #{fused_matmul.1} parent=11 // pred_region
        %p249 = scmp.lt.s32.totalorder %s23, 0
        %s250 = scalar_select %p249, %s23, 0
        %s251 = scalar_lea.vmem %s2, %s250
      $region20: #{fused_matmul.1} parent=11 // pred_fallthru
        _
      // Predicated region
      $region21: #{fused_matmul.1} parent=11 // pred_check
        %p252 = pneg %p139
      $region22: #{fused_matmul.1} parent=11 // pred_check_branch
        %254 = sbr.rel (%p252) target = $region24
      $region23: #{fused_matmul.1} parent=11 // pred_region
        %p255 = scmp.lt.s32.totalorder %s23, 0
        %s256 = scalar_select %p255, %s23, 0
        %s257 = scalar_lea.vmem %s3, %s256
      $region24: #{fused_matmul.1} parent=11 // pred_fallthru
        _
      // Predicated region
      $region25: #{fused_matmul.1} parent=11 // pred_check
        %p258 = pneg %p165
      $region26: #{fused_matmul.1} parent=11 // pred_check_branch
        %260 = sbr.rel (%p258) target = $region28
      $region27: #{fused_matmul.1} parent=11 // pred_region
        %p261 = scmp.lt.s32.totalorder %s23, 0
        %s262 = scalar_select %p261, %s23, 0
        %s263 = scalar_lea.vmem %s4, %s262
      $region28: #{fused_matmul.1} parent=11 // pred_fallthru
        _
      // Predicated region
      $region29: #{fused_matmul.1} parent=11 // pred_check
        %p264 = pneg %p191
      $region30: #{fused_matmul.1} parent=11 // pred_check_branch
        %266 = sbr.rel (%p264) target = $region32
      $region31: #{fused_matmul.1} parent=11 // pred_region
        %p267 = scmp.lt.s32.totalorder %s23, 0
        %s268 = scalar_select %p267, %s23, 0
        %s269 = scalar_lea.vmem %s5, %s268
      $region32: #{fused_matmul.1} parent=11 // pred_fallthru
        _
    $region12: #{fused_matmul.1} parent=5 // pred_fallthru
      _
    %p270 = scmp.lt.s32.totalorder %s12, 4
    // Predicated region
    $region33: #{fused_matmul.1} parent=5 // pred_check
      %p271 = pneg %p270
    $region34: #{fused_matmul.1} parent=5 // pred_check_branch
      %273 = sbr.rel (%p271) target = $region36
    $region35: #{fused_matmul.1} parent=5 // pred_region
      // Predicated region
      $region37: #{fused_matmul.1} parent=35 // pred_check
        %p274 = pneg %p53
      $region38: #{fused_matmul.1} parent=35 // pred_check_branch
        %276 = sbr.rel (%p274) target = $region40
      $region39: #{fused_matmul.1} parent=35 // pred_region
        %s277 = smul.u32 64, %s19
        %p278 = scmp.lt.s32.totalorder %s277, 255
        %s279 = scalar_select %p278, %s277, 255
        %p280 = scmp.lt.s32.totalorder %s21, 0
        %s281 = scalar_select %p280, %s21, 0
        %s282 = sadd.s32 %s281, %s279
        %s283 = smul.addr %s282, 4
        %s284 = scalar_lea.vmem %s0, %s283
        %s285 = smul.u32 64, %s19
      $region40: #{fused_matmul.1} parent=35 // pred_fallthru
        _
    $region36: #{fused_matmul.1} parent=5 // pred_fallthru
      _
    %p286 = scmp.le.s32.totalorder 1, %s12
    %p287 = scmp.lt.s32.totalorder %s12, 5
    %p288 = pnand %p286, %p287
    %p289 = pneg %p288
    // Predicated region
    $region41: #{fused_matmul.1} parent=5 // pred_check
      _
    $region42: #{fused_matmul.1} parent=5 // pred_check_branch
      %291 = sbr.rel (%p288) target = $region44
    $region43: #{fused_matmul.1} parent=5 // pred_region
      %s292 = ssub.s32 %s12, 1
      %s293 = smul.u32 64, %s22
      %p294 = scmp.lt.s32.totalorder %s293, 255
      %s295 = scalar_select %p294, %s293, 255
      %p296 = scmp.lt.s32.totalorder %s24, 0
      %s297 = scalar_select %p296, %s24, 0
      %s298 = sadd.s32 %s297, %s295
      %s299 = smul.addr %s298, 4
      %s300 = scalar_lea.vmem %s0, %s299
      %p301 = pneg %p59
      %p302 = pneg %p56
      %s303 = smul.u32 7, %s24
      %p304 = scmp.lt.s32.totalorder %s303, 6
      %s305 = scalar_select %p304, %s303, 6
      %p306 = scmp.lt.s32.totalorder %s23, 0
      %s307 = scalar_select %p306, %s23, 0
      %s308 = sadd.s32 %s307, %s305
      %s309 = smul.addr %s308, 4
      %s310 = scalar_lea.vmem %s1, %s309
      %p311 = pneg %p87
      %p312 = pneg %p84
      %p313 = scmp.lt.s32.totalorder %s23, 0
      %s314 = scalar_select %p313, %s23, 0
      %s315 = scalar_lea.vmem %s2, %s314
      %p316 = pneg %p113
      %p317 = pneg %p110
      %p318 = scmp.lt.s32.totalorder %s23, 0
      %s319 = scalar_select %p318, %s23, 0
      %s320 = scalar_lea.vmem %s3, %s319
      %p321 = pneg %p139
      %p322 = pneg %p136
      %p323 = scmp.lt.s32.totalorder %s23, 0
      %s324 = scalar_select %p323, %s23, 0
      %s325 = scalar_lea.vmem %s4, %s324
      %p326 = pneg %p165
      %p327 = pneg %p162
      %p328 = scmp.lt.s32.totalorder %s23, 0
      %s329 = scalar_select %p328, %s23, 0
      %s330 = scalar_lea.vmem %s5, %s329
      %p331 = pneg %p191
      %p332 = pneg %p188
      %p333 = pneg %p219
      %p334 = pneg %p216
      %s335 = smul.u32 64, %s22
      %p336 = scmp.lt.s32.totalorder %s335, 255
      %s337 = scalar_select %p336, %s335, 255
      %p338 = scmp.lt.s32.totalorder %s23, 0
      %s339 = scalar_select %p338, %s23, 0
      %s340 = sadd.s32 %s339, %s337
      %s341 = smul.addr %s340, 4
      %s342 = scalar_lea.vmem %s6, %s341
      %s343 = smul.u32 64, %s22
      %p344 = scmp.lt.s32.totalorder %s343, 255
      %s345 = scalar_select %p344, %s343, 255
      %p346 = scmp.lt.s32.totalorder %s24, 0
      %s347 = scalar_select %p346, %s24, 0
      %s348 = sadd.s32 %s347, %s345
      %s349 = smul.addr %s348, 4
      %s350 = scalar_lea.vmem %s0, %s349
      %s351 = smul.u32 64, %s22
      %s352 = smul.u32 7, %s24
      %p353 = scmp.lt.s32.totalorder %s352, 6
      %s354 = scalar_select %p353, %s352, 6
      %p355 = scmp.lt.s32.totalorder %s23, 0
      %s356 = scalar_select %p355, %s23, 0
      %s357 = sadd.s32 %s356, %s354
      %s358 = smul.addr %s357, 4
      %s359 = scalar_lea.vmem %s1, %s358
      %s360 = smul.u32 7, %s24
      %p361 = scmp.lt.s32.totalorder %s23, 0
      %s362 = scalar_select %p361, %s23, 0
      %s363 = scalar_lea.vmem %s2, %s362
      %p364 = scmp.lt.s32.totalorder %s23, 0
      %s365 = scalar_select %p364, %s23, 0
      %s366 = scalar_lea.vmem %s3, %s365
      %p367 = scmp.lt.s32.totalorder %s23, 0
      %s368 = scalar_select %p367, %s23, 0
      %s369 = scalar_lea.vmem %s4, %s368
      %p370 = scmp.lt.s32.totalorder %s23, 0
      %s371 = scalar_select %p370, %s23, 0
      %s372 = scalar_lea.vmem %s5, %s371
      %s373 = smul.u32 64, %s22
      %p374 = scmp.lt.s32.totalorder %s373, 255
      %s375 = scalar_select %p374, %s373, 255
      %p376 = scmp.lt.s32.totalorder %s23, 0
      %s377 = scalar_select %p376, %s23, 0
      %s378 = sadd.s32 %s377, %s375
      %s379 = smul.addr %s378, 4
      %s380 = scalar_lea.vmem %s6, %s379
      %s381 = smul.u32 64, %s22
      %p383 = scmp.eq.s32.totalorder %s24, 0
      // Predicated region
      $region45: #{fused_matmul.1} parent=43 // pred_check
        %p384 = pneg %p383
      $region46: #{fused_matmul.1} parent=43 // pred_check_branch
        %386 = sbr.rel (%p384) target = $region48
      $region47: #{fused_matmul.1} parent=43 // pred_region
        %vm387 = vcmask 64512
        %388 = vst.msk [vmem:[#allocation2] sm:$0xff] %vm387, 0.0
        %389 = vst.msk [vmem:[#allocation2 + $0x8] sm:$0xff] %vm387, 0.0
        %390 = vst.msk [vmem:[#allocation2 + $0x10] sm:$0xff] %vm387, 0.0
        %391 = vst.msk [vmem:[#allocation2 + $0x18] sm:$0xff] %vm387, 0.0
        %392 = vst.msk [vmem:[#allocation2 + $0x20] sm:$0xff] %vm387, 0.0
        %393 = vst.msk [vmem:[#allocation2 + $0x28] sm:$0xff] %vm387, 0.0
        %394 = vst.msk [vmem:[#allocation2 + $0x30] sm:$0xff] %vm387, 0.0
        %395 = vst.msk [vmem:[#allocation2 + $0x38] sm:$0xff] %vm387, 0.0
        %396 = vst.msk [vmem:[#allocation2 + $0x40] sm:$0xff] %vm387, 0.0
        %397 = vst.msk [vmem:[#allocation2 + $0x48] sm:$0xff] %vm387, 0.0
        %398 = vst.msk [vmem:[#allocation2 + $0x50] sm:$0xff] %vm387, 0.0
        %399 = vst.msk [vmem:[#allocation2 + $0x58] sm:$0xff] %vm387, 0.0
        %400 = vst.msk [vmem:[#allocation2 + $0x60] sm:$0xff] %vm387, 0.0
        %401 = vst.msk [vmem:[#allocation2 + $0x68] sm:$0xff] %vm387, 0.0
        %402 = vst.msk [vmem:[#allocation2 + $0x70] sm:$0xff] %vm387, 0.0
        %403 = vst.msk [vmem:[#allocation2 + $0x78] sm:$0xff] %vm387, 0.0
        %404 = vst.msk [vmem:[#allocation2 + $0x80] sm:$0xff] %vm387, 0.0
        %405 = vst.msk [vmem:[#allocation2 + $0x88] sm:$0xff] %vm387, 0.0
        %406 = vst.msk [vmem:[#allocation2 + $0x90] sm:$0xff] %vm387, 0.0
        %407 = vst.msk [vmem:[#allocation2 + $0x98] sm:$0xff] %vm387, 0.0
        %408 = vst.msk [vmem:[#allocation2 + $0xa0] sm:$0xff] %vm387, 0.0
        %409 = vst.msk [vmem:[#allocation2 + $0xa8] sm:$0xff] %vm387, 0.0
        %410 = vst.msk [vmem:[#allocation2 + $0xb0] sm:$0xff] %vm387, 0.0
        %411 = vst.msk [vmem:[#allocation2 + $0xb8] sm:$0xff] %vm387, 0.0
        %412 = vst.msk [vmem:[#allocation2 + $0xc0] sm:$0xff] %vm387, 0.0
        %413 = vst.msk [vmem:[#allocation2 + $0xc8] sm:$0xff] %vm387, 0.0
        %414 = vst.msk [vmem:[#allocation2 + $0xd0] sm:$0xff] %vm387, 0.0
        %415 = vst.msk [vmem:[#allocation2 + $0xd8] sm:$0xff] %vm387, 0.0
        %416 = vst.msk [vmem:[#allocation2 + $0xe0] sm:$0xff] %vm387, 0.0
        %417 = vst.msk [vmem:[#allocation2 + $0xe8] sm:$0xff] %vm387, 0.0
        %418 = vst.msk [vmem:[#allocation2 + $0xf0] sm:$0xff] %vm387, 0.0
        %419 = vst.msk [vmem:[#allocation2 + $0xf8] sm:$0xff] %vm387, 0.0
        %420 = vst.msk [vmem:[#allocation2 + $0x100] sm:$0xff] %vm387, 0.0
        %421 = vst.msk [vmem:[#allocation2 + $0x108] sm:$0xff] %vm387, 0.0
        %422 = vst.msk [vmem:[#allocation2 + $0x110] sm:$0xff] %vm387, 0.0
        %423 = vst.msk [vmem:[#allocation2 + $0x118] sm:$0xff] %vm387, 0.0
        %424 = vst.msk [vmem:[#allocation2 + $0x120] sm:$0xff] %vm387, 0.0
        %425 = vst.msk [vmem:[#allocation2 + $0x128] sm:$0xff] %vm387, 0.0
        %426 = vst.msk [vmem:[#allocation2 + $0x130] sm:$0xff] %vm387, 0.0
        %427 = vst.msk [vmem:[#allocation2 + $0x138] sm:$0xff] %vm387, 0.0
        %428 = vst.msk [vmem:[#allocation2 + $0x140] sm:$0xff] %vm387, 0.0
        %429 = vst.msk [vmem:[#allocation2 + $0x148] sm:$0xff] %vm387, 0.0
        %430 = vst.msk [vmem:[#allocation2 + $0x150] sm:$0xff] %vm387, 0.0
        %431 = vst.msk [vmem:[#allocation2 + $0x158] sm:$0xff] %vm387, 0.0
        %432 = vst.msk [vmem:[#allocation2 + $0x160] sm:$0xff] %vm387, 0.0
        %433 = vst.msk [vmem:[#allocation2 + $0x168] sm:$0xff] %vm387, 0.0
        %434 = vst.msk [vmem:[#allocation2 + $0x170] sm:$0xff] %vm387, 0.0
        %435 = vst.msk [vmem:[#allocation2 + $0x178] sm:$0xff] %vm387, 0.0
        %436 = vst.msk [vmem:[#allocation2 + $0x180] sm:$0xff] %vm387, 0.0
        %437 = vst.msk [vmem:[#allocation2 + $0x188] sm:$0xff] %vm387, 0.0
        %438 = vst.msk [vmem:[#allocation2 + $0x190] sm:$0xff] %vm387, 0.0
        %439 = vst.msk [vmem:[#allocation2 + $0x198] sm:$0xff] %vm387, 0.0
        %440 = vst.msk [vmem:[#allocation2 + $0x1a0] sm:$0xff] %vm387, 0.0
        %441 = vst.msk [vmem:[#allocation2 + $0x1a8] sm:$0xff] %vm387, 0.0
        %442 = vst.msk [vmem:[#allocation2 + $0x1b0] sm:$0xff] %vm387, 0.0
        %443 = vst.msk [vmem:[#allocation2 + $0x1b8] sm:$0xff] %vm387, 0.0
        %444 = vst.msk [vmem:[#allocation2 + $0x1c0] sm:$0xff] %vm387, 0.0
        %445 = vst.msk [vmem:[#allocation2 + $0x1c8] sm:$0xff] %vm387, 0.0
        %446 = vst.msk [vmem:[#allocation2 + $0x1d0] sm:$0xff] %vm387, 0.0
        %447 = vst.msk [vmem:[#allocation2 + $0x1d8] sm:$0xff] %vm387, 0.0
        %448 = vst.msk [vmem:[#allocation2 + $0x1e0] sm:$0xff] %vm387, 0.0
        %449 = vst.msk [vmem:[#allocation2 + $0x1e8] sm:$0xff] %vm387, 0.0
        %450 = vst.msk [vmem:[#allocation2 + $0x1f0] sm:$0xff] %vm387, 0.0
        %451 = vst.msk [vmem:[#allocation2 + $0x1f8] sm:$0xff] %vm387, 0.0
      $region48: #{fused_matmul.1} parent=43 // pred_fallthru
        _
      %v452 = vld [vmem:[%s350] sm:$0xf]
      %v453 = vld [vmem:[%s350 + $0x4] sm:$0xf]
      %v454 = vld [vmem:[%s350 + $0x8] sm:$0xf]
      %v455 = vld [vmem:[%s350 + $0xc] sm:$0xf]
      %v456 = vld [vmem:[%s350 + $0x10] sm:$0xf]
      %v457 = vld [vmem:[%s350 + $0x14] sm:$0xf]
      %v458 = vld [vmem:[%s350 + $0x18] sm:$0xf]
      %v459 = vld [vmem:[%s350 + $0x1c] sm:$0xf]
      %v460 = vld [vmem:[%s350 + $0x20] sm:$0xf]
      %v461 = vld [vmem:[%s350 + $0x24] sm:$0xf]
      %v462 = vld [vmem:[%s350 + $0x28] sm:$0xf]
      %v463 = vld [vmem:[%s350 + $0x2c] sm:$0xf]
      %v464 = vld [vmem:[%s350 + $0x30] sm:$0xf]
      %v465 = vld [vmem:[%s350 + $0x34] sm:$0xf]
      %v466 = vld [vmem:[%s350 + $0x38] sm:$0xf]
      %v467 = vld [vmem:[%s350 + $0x3c] sm:$0xf]
      %v468 = vld [vmem:[%s350 + $0x40] sm:$0xf]
      %v469 = vld [vmem:[%s350 + $0x44] sm:$0xf]
      %v470 = vld [vmem:[%s350 + $0x48] sm:$0xf]
      %v471 = vld [vmem:[%s350 + $0x4c] sm:$0xf]
      %v472 = vld [vmem:[%s350 + $0x50] sm:$0xf]
      %v473 = vld [vmem:[%s350 + $0x54] sm:$0xf]
      %v474 = vld [vmem:[%s350 + $0x58] sm:$0xf]
      %v475 = vld [vmem:[%s350 + $0x5c] sm:$0xf]
      %v476 = vld [vmem:[%s350 + $0x60] sm:$0xf]
      %v477 = vld [vmem:[%s350 + $0x64] sm:$0xf]
      %v478 = vld [vmem:[%s350 + $0x68] sm:$0xf]
      %v479 = vld [vmem:[%s350 + $0x6c] sm:$0xf]
      %v480 = vld [vmem:[%s350 + $0x70] sm:$0xf]
      %v481 = vld [vmem:[%s350 + $0x74] sm:$0xf]
      %v482 = vld [vmem:[%s350 + $0x78] sm:$0xf]
      %v483 = vld [vmem:[%s350 + $0x7c] sm:$0xf]
      %v484 = vld [vmem:[%s350 + $0x80] sm:$0xf]
      %v485 = vld [vmem:[%s350 + $0x84] sm:$0xf]
      %v486 = vld [vmem:[%s350 + $0x88] sm:$0xf]
      %v487 = vld [vmem:[%s350 + $0x8c] sm:$0xf]
      %v488 = vld [vmem:[%s350 + $0x90] sm:$0xf]
      %v489 = vld [vmem:[%s350 + $0x94] sm:$0xf]
      %v490 = vld [vmem:[%s350 + $0x98] sm:$0xf]
      %v491 = vld [vmem:[%s350 + $0x9c] sm:$0xf]
      %v492 = vld [vmem:[%s350 + $0xa0] sm:$0xf]
      %v493 = vld [vmem:[%s350 + $0xa4] sm:$0xf]
      %v494 = vld [vmem:[%s350 + $0xa8] sm:$0xf]
      %v495 = vld [vmem:[%s350 + $0xac] sm:$0xf]
      %v496 = vld [vmem:[%s350 + $0xb0] sm:$0xf]
      %v497 = vld [vmem:[%s350 + $0xb4] sm:$0xf]
      %v498 = vld [vmem:[%s350 + $0xb8] sm:$0xf]
      %v499 = vld [vmem:[%s350 + $0xbc] sm:$0xf]
      %v500 = vld [vmem:[%s350 + $0xc0] sm:$0xf]
      %v501 = vld [vmem:[%s350 + $0xc4] sm:$0xf]
      %v502 = vld [vmem:[%s350 + $0xc8] sm:$0xf]
      %v503 = vld [vmem:[%s350 + $0xcc] sm:$0xf]
      %v504 = vld [vmem:[%s350 + $0xd0] sm:$0xf]
      %v505 = vld [vmem:[%s350 + $0xd4] sm:$0xf]
      %v506 = vld [vmem:[%s350 + $0xd8] sm:$0xf]
      %v507 = vld [vmem:[%s350 + $0xdc] sm:$0xf]
      %v508 = vld [vmem:[%s350 + $0xe0] sm:$0xf]
      %v509 = vld [vmem:[%s350 + $0xe4] sm:$0xf]
      %v510 = vld [vmem:[%s350 + $0xe8] sm:$0xf]
      %v511 = vld [vmem:[%s350 + $0xec] sm:$0xf]
      %v512 = vld [vmem:[%s350 + $0xf0] sm:$0xf]
      %v513 = vld [vmem:[%s350 + $0xf4] sm:$0xf]
      %v514 = vld [vmem:[%s350 + $0xf8] sm:$0xf]
      %v515 = vld [vmem:[%s350 + $0xfc] sm:$0xf]
      %v516 = vld [vmem:[#allocation2] sm:$0xff]
      %v517 = vld [vmem:[#allocation2 + $0x8] sm:$0xff]
      %v518 = vld [vmem:[#allocation2 + $0x10] sm:$0xff]
      %v519 = vld [vmem:[#allocation2 + $0x18] sm:$0xff]
      %v520 = vld [vmem:[#allocation2 + $0x20] sm:$0xff]
      %v521 = vld [vmem:[#allocation2 + $0x28] sm:$0xff]
      %v522 = vld [vmem:[#allocation2 + $0x30] sm:$0xff]
      %v523 = vld [vmem:[#allocation2 + $0x38] sm:$0xff]
      %v524 = vld [vmem:[#allocation2 + $0x40] sm:$0xff]
      %v525 = vld [vmem:[#allocation2 + $0x48] sm:$0xff]
      %v526 = vld [vmem:[#allocation2 + $0x50] sm:$0xff]
      %v527 = vld [vmem:[#allocation2 + $0x58] sm:$0xff]
      %v528 = vld [vmem:[#allocation2 + $0x60] sm:$0xff]
      %v529 = vld [vmem:[#allocation2 + $0x68] sm:$0xff]
      %v530 = vld [vmem:[#allocation2 + $0x70] sm:$0xff]
      %v531 = vld [vmem:[#allocation2 + $0x78] sm:$0xff]
      %v532 = vld [vmem:[#allocation2 + $0x80] sm:$0xff]
      %v533 = vld [vmem:[#allocation2 + $0x88] sm:$0xff]
      %v534 = vld [vmem:[#allocation2 + $0x90] sm:$0xff]
      %v535 = vld [vmem:[#allocation2 + $0x98] sm:$0xff]
      %v536 = vld [vmem:[#allocation2 + $0xa0] sm:$0xff]
      %v537 = vld [vmem:[#allocation2 + $0xa8] sm:$0xff]
      %v538 = vld [vmem:[#allocation2 + $0xb0] sm:$0xff]
      %v539 = vld [vmem:[#allocation2 + $0xb8] sm:$0xff]
      %v540 = vld [vmem:[#allocation2 + $0xc0] sm:$0xff]
      %v541 = vld [vmem:[#allocation2 + $0xc8] sm:$0xff]
      %v542 = vld [vmem:[#allocation2 + $0xd0] sm:$0xff]
      %v543 = vld [vmem:[#allocation2 + $0xd8] sm:$0xff]
      %v544 = vld [vmem:[#allocation2 + $0xe0] sm:$0xff]
      %v545 = vld [vmem:[#allocation2 + $0xe8] sm:$0xff]
      %v546 = vld [vmem:[#allocation2 + $0xf0] sm:$0xff]
      %v547 = vld [vmem:[#allocation2 + $0xf8] sm:$0xff]
      %v548 = vld [vmem:[#allocation2 + $0x100] sm:$0xff]
      %v549 = vld [vmem:[#allocation2 + $0x108] sm:$0xff]
      %v550 = vld [vmem:[#allocation2 + $0x110] sm:$0xff]
      %v551 = vld [vmem:[#allocation2 + $0x118] sm:$0xff]
      %v552 = vld [vmem:[#allocation2 + $0x120] sm:$0xff]
      %v553 = vld [vmem:[#allocation2 + $0x128] sm:$0xff]
      %v554 = vld [vmem:[#allocation2 + $0x130] sm:$0xff]
      %v555 = vld [vmem:[#allocation2 + $0x138] sm:$0xff]
      %v556 = vld [vmem:[#allocation2 + $0x140] sm:$0xff]
      %v557 = vld [vmem:[#allocation2 + $0x148] sm:$0xff]
      %v558 = vld [vmem:[#allocation2 + $0x150] sm:$0xff]
      %v559 = vld [vmem:[#allocation2 + $0x158] sm:$0xff]
      %v560 = vld [vmem:[#allocation2 + $0x160] sm:$0xff]
      %v561 = vld [vmem:[#allocation2 + $0x168] sm:$0xff]
      %v562 = vld [vmem:[#allocation2 + $0x170] sm:$0xff]
      %v563 = vld [vmem:[#allocation2 + $0x178] sm:$0xff]
      %v564 = vld [vmem:[#allocation2 + $0x180] sm:$0xff]
      %v565 = vld [vmem:[#allocation2 + $0x188] sm:$0xff]
      %v566 = vld [vmem:[#allocation2 + $0x190] sm:$0xff]
      %v567 = vld [vmem:[#allocation2 + $0x198] sm:$0xff]
      %v568 = vld [vmem:[#allocation2 + $0x1a0] sm:$0xff]
      %v569 = vld [vmem:[#allocation2 + $0x1a8] sm:$0xff]
      %v570 = vld [vmem:[#allocation2 + $0x1b0] sm:$0xff]
      %v571 = vld [vmem:[#allocation2 + $0x1b8] sm:$0xff]
      %v572 = vld [vmem:[#allocation2 + $0x1c0] sm:$0xff]
      %v573 = vld [vmem:[#allocation2 + $0x1c8] sm:$0xff]
      %v574 = vld [vmem:[#allocation2 + $0x1d0] sm:$0xff]
      %v575 = vld [vmem:[#allocation2 + $0x1d8] sm:$0xff]
      %v576 = vld [vmem:[#allocation2 + $0x1e0] sm:$0xff]
      %v577 = vld [vmem:[#allocation2 + $0x1e8] sm:$0xff]
      %v578 = vld [vmem:[#allocation2 + $0x1f0] sm:$0xff]
      %v579 = vld [vmem:[#allocation2 + $0x1f8] sm:$0xff]
      %v580 = vld [vmem:[%s359] sm:$0xf]
      %v581 = vld [vmem:[%s359 + $0x4] sm:$0xf]
      %v582 = vld [vmem:[%s359 + $0x8] sm:$0xf]
      %v583 = vld [vmem:[%s359 + $0xc] sm:$0xf]
      %v584 = vld [vmem:[%s359 + $0x10] sm:$0xf]
      %v585 = vld [vmem:[%s359 + $0x14] sm:$0xf]
      %v586 = vld [vmem:[%s359 + $0x18] sm:$0x1]
      %v651 = vunpack.c.l.b16 %v452
      %v652 = vunpack.c.l.b16 %v453
      %v653 = vunpack.c.l.b16 %v454
      %v654 = vunpack.c.l.b16 %v455
      %v655 = vunpack.c.l.b16 %v456
      %v656 = vunpack.c.l.b16 %v457
      %v657 = vunpack.c.l.b16 %v458
      %v658 = vunpack.c.l.b16 %v459
      %v659 = vunpack.c.l.b16 %v460
      %v660 = vunpack.c.l.b16 %v461
      %v661 = vunpack.c.l.b16 %v462
      %v662 = vunpack.c.l.b16 %v463
      %v663 = vunpack.c.l.b16 %v464
      %v664 = vunpack.c.l.b16 %v465
      %v665 = vunpack.c.l.b16 %v466
      %v666 = vunpack.c.l.b16 %v467
      %v667 = vunpack.c.l.b16 %v468
      %v668 = vunpack.c.l.b16 %v469
      %v669 = vunpack.c.l.b16 %v470
      %v670 = vunpack.c.l.b16 %v471
      %v671 = vunpack.c.l.b16 %v472
      %v672 = vunpack.c.l.b16 %v473
      %v673 = vunpack.c.l.b16 %v474
      %v674 = vunpack.c.l.b16 %v475
      %v675 = vunpack.c.l.b16 %v476
      %v676 = vunpack.c.l.b16 %v477
      %v677 = vunpack.c.l.b16 %v478
      %v678 = vunpack.c.l.b16 %v479
      %v679 = vunpack.c.l.b16 %v480
      %v680 = vunpack.c.l.b16 %v481
      %v681 = vunpack.c.l.b16 %v482
      %v682 = vunpack.c.l.b16 %v483
      %v683 = vunpack.c.l.b16 %v484
      %v684 = vunpack.c.l.b16 %v485
      %v685 = vunpack.c.l.b16 %v486
      %v686 = vunpack.c.l.b16 %v487
      %v687 = vunpack.c.l.b16 %v488
      %v688 = vunpack.c.l.b16 %v489
      %v689 = vunpack.c.l.b16 %v490
      %v690 = vunpack.c.l.b16 %v491
      %v691 = vunpack.c.l.b16 %v492
      %v692 = vunpack.c.l.b16 %v493
      %v693 = vunpack.c.l.b16 %v494
      %v694 = vunpack.c.l.b16 %v495
      %v695 = vunpack.c.l.b16 %v496
      %v696 = vunpack.c.l.b16 %v497
      %v697 = vunpack.c.l.b16 %v498
      %v698 = vunpack.c.l.b16 %v499
      %v699 = vunpack.c.l.b16 %v500
      %v700 = vunpack.c.l.b16 %v501
      %v701 = vunpack.c.l.b16 %v502
      %v702 = vunpack.c.l.b16 %v503
      %v703 = vunpack.c.l.b16 %v504
      %v704 = vunpack.c.l.b16 %v505
      %v705 = vunpack.c.l.b16 %v506
      %v706 = vunpack.c.l.b16 %v507
      %v707 = vunpack.c.l.b16 %v508
      %v708 = vunpack.c.l.b16 %v509
      %v709 = vunpack.c.l.b16 %v510
      %v710 = vunpack.c.l.b16 %v511
      %v711 = vunpack.c.l.b16 %v512
      %v712 = vunpack.c.l.b16 %v513
      %v713 = vunpack.c.l.b16 %v514
      %v714 = vunpack.c.l.b16 %v515
      %v715 = vpack.c.b16 %v652, %v651
      %v716 = vpack.c.b16 %v654, %v653
      %v717 = vpack.c.b16 %v656, %v655
      %v718 = vpack.c.b16 %v658, %v657
      %v719 = vpack.c.b16 %v660, %v659
      %v720 = vpack.c.b16 %v662, %v661
      %v721 = vpack.c.b16 %v664, %v663
      %v722 = vpack.c.b16 %v666, %v665
      %v723 = vpack.c.b16 %v668, %v667
      %v724 = vpack.c.b16 %v670, %v669
      %v725 = vpack.c.b16 %v672, %v671
      %v726 = vpack.c.b16 %v674, %v673
      %v727 = vpack.c.b16 %v676, %v675
      %v728 = vpack.c.b16 %v678, %v677
      %v729 = vpack.c.b16 %v680, %v679
      %v730 = vpack.c.b16 %v682, %v681
      %v731 = vpack.c.b16 %v684, %v683
      %v732 = vpack.c.b16 %v686, %v685
      %v733 = vpack.c.b16 %v688, %v687
      %v734 = vpack.c.b16 %v690, %v689
      %v735 = vpack.c.b16 %v692, %v691
      %v736 = vpack.c.b16 %v694, %v693
      %v737 = vpack.c.b16 %v696, %v695
      %v738 = vpack.c.b16 %v698, %v697
      %v739 = vpack.c.b16 %v700, %v699
      %v740 = vpack.c.b16 %v702, %v701
      %v741 = vpack.c.b16 %v704, %v703
      %v742 = vpack.c.b16 %v706, %v705
      %v743 = vpack.c.b16 %v708, %v707
      %v744 = vpack.c.b16 %v710, %v709
      %v745 = vpack.c.b16 %v712, %v711
      %v746 = vpack.c.b16 %v714, %v713
      %v754 = vunpack.c.l.b16 %v580
      %v755 = vunpack.c.l.b16 %v581
      %v756 = vunpack.c.l.b16 %v582
      %v757 = vunpack.c.l.b16 %v583
      %v758 = vunpack.c.l.b16 %v584
      %v759 = vunpack.c.l.b16 %v585
      %v760 = vunpack.c.l.b16 %v586
      %v761 = vpack.c.b16 %v755, %v754
      %v762 = vpack.c.b16 %v757, %v756
      %v763 = vpack.c.b16 %v759, %v758
      %v764 = vpack.c.b16 %v760, %v760
      %vm768 = vcmask 400384
      %v770 = vsel %vm768, %v715, 0
      %v773 = vsel %vm768, %v716, 0
      %v776 = vsel %vm768, %v717, 0
      %v779 = vsel %vm768, %v718, 0
      %v782 = vsel %vm768, %v719, 0
      %v785 = vsel %vm768, %v720, 0
      %v788 = vsel %vm768, %v721, 0
      %v791 = vsel %vm768, %v722, 0
      %v794 = vsel %vm768, %v723, 0
      %v797 = vsel %vm768, %v724, 0
      %v800 = vsel %vm768, %v725, 0
      %v803 = vsel %vm768, %v726, 0
      %v806 = vsel %vm768, %v727, 0
      %v809 = vsel %vm768, %v728, 0
      %v812 = vsel %vm768, %v729, 0
      %v815 = vsel %vm768, %v730, 0
      %v818 = vsel %vm768, %v731, 0
      %v821 = vsel %vm768, %v732, 0
      %v824 = vsel %vm768, %v733, 0
      %v827 = vsel %vm768, %v734, 0
      %v830 = vsel %vm768, %v735, 0
      %v833 = vsel %vm768, %v736, 0
      %v836 = vsel %vm768, %v737, 0
      %v839 = vsel %vm768, %v738, 0
      %v842 = vsel %vm768, %v739, 0
      %v845 = vsel %vm768, %v740, 0
      %v848 = vsel %vm768, %v741, 0
      %v851 = vsel %vm768, %v742, 0
      %v854 = vsel %vm768, %v743, 0
      %v857 = vsel %vm768, %v744, 0
      %v860 = vsel %vm768, %v745, 0
      %v863 = vsel %vm768, %v746, 0
      %vm865 = vcmask 1040384
      %v866 = vsel 0, 4294967295, 65535
      %v867 = vsel %vm865, %v866, 0
      %v869 = vand.u32 %v764, %v867
      %871 = vmatprep.subr.bf16.mxu0 0
      %872 = vmatpush1.bf16.msra.mxu0 0
      %873 = vmatprep.subr.bf16.mxu0 0
      %874 = vmatpush1.bf16.msra.mxu0 0
      %875 = vmatprep.subr.bf16.mxu0 0
      %876 = vmatpush1.bf16.msra.mxu0 0
      %877 = vmatprep.subr.bf16.mxu0 0
      %878 = vmatpush1.bf16.msra.mxu0 0
      %879 = vmatprep.subr.bf16.mxu0 0
      %880 = vmatpush1.bf16.msra.mxu0 %v869
      %881 = vmatprep.subr.bf16.mxu0 0
      %882 = vmatpush1.bf16.msra.mxu0 %v763
      %883 = vmatprep.subr.bf16.mxu0 0
      %884 = vmatpush1.bf16.msra.mxu0 %v762
      %885 = vmatprep.subr.bf16.mxu0 0
      %886 = vmatpush1.bf16.msra.mxu0 %v761
      %887 = vmatprep.subr.bf16.mxu0 0
      %888 = vmatpush2.bf16.msra.mxu0 0
      %889 = vmatprep.subr.bf16.mxu0 0
      %890 = vmatpush2.bf16.msra.mxu0 0
      %891 = vmatprep.subr.bf16.mxu0 0
      %892 = vmatpush2.bf16.msra.mxu0 0
      %893 = vmatprep.subr.bf16.mxu0 0
      %894 = vmatpush2.bf16.msra.mxu0 0
      %895 = vmatprep.subr.bf16.mxu0 0
      %896 = vmatpush2.bf16.msra.mxu0 0
      %897 = vmatprep.subr.bf16.mxu0 0
      %898 = vmatpush2.bf16.msra.mxu0 0
      %899 = vmatprep.subr.bf16.mxu0 0
      %900 = vmatpush2.bf16.msra.mxu0 0
      %901 = vmatprep.subr.bf16.mxu0 0
      %902 = vmatpush2.bf16.msra.mxu0 0
      %903 = vmatprep.mubr.bf16.mxu0 0
      %904 = vmatmul.mubr.bf16.gmra.mxu0 %v770
      %v905 = vpop.f32.mrf.mxu0
      %v906 = vadd.f32 0.0, %v905
      %v907 = vpop.f32.mrf.mxu0
      %v908 = vpop.f32.mrf.mxu0
      %v909 = vadd.f32 0.0, %v908
      %v910 = vpop.f32.mrf.mxu0
      %911 = vmatprep.mubr.bf16.mxu0 0
      %912 = vmatmul.mubr.bf16.gmra.mxu0 %v773
      %v913 = vpop.f32.mrf.mxu0
      %v914 = vadd.f32 0.0, %v913
      %v915 = vpop.f32.mrf.mxu0
      %v916 = vpop.f32.mrf.mxu0
      %v917 = vadd.f32 0.0, %v916
      %v918 = vpop.f32.mrf.mxu0
      %919 = vmatprep.mubr.bf16.mxu0 0
      %920 = vmatmul.mubr.bf16.gmra.mxu0 %v776
      %v921 = vpop.f32.mrf.mxu0
      %v922 = vadd.f32 0.0, %v921
      %v923 = vpop.f32.mrf.mxu0
      %v924 = vpop.f32.mrf.mxu0
      %v925 = vadd.f32 0.0, %v924
      %v926 = vpop.f32.mrf.mxu0
      %927 = vmatprep.mubr.bf16.mxu0 0
      %928 = vmatmul.mubr.bf16.gmra.mxu0 %v779
      %v929 = vpop.f32.mrf.mxu0
      %v930 = vadd.f32 0.0, %v929
      %v931 = vpop.f32.mrf.mxu0
      %v932 = vpop.f32.mrf.mxu0
      %v933 = vadd.f32 0.0, %v932
      %v934 = vpop.f32.mrf.mxu0
      %935 = vmatprep.mubr.bf16.mxu0 0
      %936 = vmatmul.mubr.bf16.gmra.mxu0 %v782
      %v937 = vpop.f32.mrf.mxu0
      %v938 = vadd.f32 0.0, %v937
      %v939 = vpop.f32.mrf.mxu0
      %v940 = vpop.f32.mrf.mxu0
      %v941 = vadd.f32 0.0, %v940
      %v942 = vpop.f32.mrf.mxu0
      %943 = vmatprep.mubr.bf16.mxu0 0
      %944 = vmatmul.mubr.bf16.gmra.mxu0 %v785
      %v945 = vpop.f32.mrf.mxu0
      %v946 = vadd.f32 0.0, %v945
      %v947 = vpop.f32.mrf.mxu0
      %v948 = vpop.f32.mrf.mxu0
      %v949 = vadd.f32 0.0, %v948
      %v950 = vpop.f32.mrf.mxu0
      %951 = vmatprep.mubr.bf16.mxu0 0
      %952 = vmatmul.mubr.bf16.gmra.mxu0 %v788
      %v953 = vpop.f32.mrf.mxu0
      %v954 = vadd.f32 0.0, %v953
      %v955 = vpop.f32.mrf.mxu0
      %v956 = vpop.f32.mrf.mxu0
      %v957 = vadd.f32 0.0, %v956
      %v958 = vpop.f32.mrf.mxu0
      %959 = vmatprep.mubr.bf16.mxu0 0
      %960 = vmatmul.mubr.bf16.gmra.mxu0 %v791
      %v961 = vpop.f32.mrf.mxu0
      %v962 = vadd.f32 0.0, %v961
      %v963 = vpop.f32.mrf.mxu0
      %v964 = vpop.f32.mrf.mxu0
      %v965 = vadd.f32 0.0, %v964
      %v966 = vpop.f32.mrf.mxu0
      %967 = vmatprep.mubr.bf16.mxu0 0
      %968 = vmatmul.mubr.bf16.gmra.mxu0 %v794
      %v969 = vpop.f32.mrf.mxu0
      %v970 = vadd.f32 0.0, %v969
      %v971 = vpop.f32.mrf.mxu0
      %v972 = vpop.f32.mrf.mxu0
      %v973 = vadd.f32 0.0, %v972
      %v974 = vpop.f32.mrf.mxu0
      %975 = vmatprep.mubr.bf16.mxu0 0
      %976 = vmatmul.mubr.bf16.gmra.mxu0 %v797
      %v977 = vpop.f32.mrf.mxu0
      %v978 = vadd.f32 0.0, %v977
      %v979 = vpop.f32.mrf.mxu0
      %v980 = vpop.f32.mrf.mxu0
      %v981 = vadd.f32 0.0, %v980
      %v982 = vpop.f32.mrf.mxu0
      %983 = vmatprep.mubr.bf16.mxu0 0
      %984 = vmatmul.mubr.bf16.gmra.mxu0 %v800
      %v985 = vpop.f32.mrf.mxu0
      %v986 = vadd.f32 0.0, %v985
      %v987 = vpop.f32.mrf.mxu0
      %v988 = vpop.f32.mrf.mxu0
      %v989 = vadd.f32 0.0, %v988
      %v990 = vpop.f32.mrf.mxu0
      %991 = vmatprep.mubr.bf16.mxu0 0
      %992 = vmatmul.mubr.bf16.gmra.mxu0 %v803
      %v993 = vpop.f32.mrf.mxu0
      %v994 = vadd.f32 0.0, %v993
      %v995 = vpop.f32.mrf.mxu0
      %v996 = vpop.f32.mrf.mxu0
      %v997 = vadd.f32 0.0, %v996
      %v998 = vpop.f32.mrf.mxu0
      %999 = vmatprep.mubr.bf16.mxu0 0
      %1000 = vmatmul.mubr.bf16.gmra.mxu0 %v806
      %v1001 = vpop.f32.mrf.mxu0
      %v1002 = vadd.f32 0.0, %v1001
      %v1003 = vpop.f32.mrf.mxu0
      %v1004 = vpop.f32.mrf.mxu0
      %v1005 = vadd.f32 0.0, %v1004
      %v1006 = vpop.f32.mrf.mxu0
      %1007 = vmatprep.mubr.bf16.mxu0 0
      %1008 = vmatmul.mubr.bf16.gmra.mxu0 %v809
      %v1009 = vpop.f32.mrf.mxu0
      %v1010 = vadd.f32 0.0, %v1009
      %v1011 = vpop.f32.mrf.mxu0
      %v1012 = vpop.f32.mrf.mxu0
      %v1013 = vadd.f32 0.0, %v1012
      %v1014 = vpop.f32.mrf.mxu0
      %1015 = vmatprep.mubr.bf16.mxu0 0
      %1016 = vmatmul.mubr.bf16.gmra.mxu0 %v812
      %v1017 = vpop.f32.mrf.mxu0
      %v1018 = vadd.f32 0.0, %v1017
      %v1019 = vpop.f32.mrf.mxu0
      %v1020 = vpop.f32.mrf.mxu0
      %v1021 = vadd.f32 0.0, %v1020
      %v1022 = vpop.f32.mrf.mxu0
      %1023 = vmatprep.mubr.bf16.mxu0 0
      %1024 = vmatmul.mubr.bf16.gmra.mxu0 %v815
      %v1025 = vpop.f32.mrf.mxu0
      %v1026 = vadd.f32 0.0, %v1025
      %v1027 = vpop.f32.mrf.mxu0
      %v1028 = vpop.f32.mrf.mxu0
      %v1029 = vadd.f32 0.0, %v1028
      %v1030 = vpop.f32.mrf.mxu0
      %1031 = vmatprep.mubr.bf16.mxu0 0
      %1032 = vmatmul.mubr.bf16.gmra.mxu0 %v818
      %v1033 = vpop.f32.mrf.mxu0
      %v1034 = vadd.f32 0.0, %v1033
      %v1035 = vpop.f32.mrf.mxu0
      %v1036 = vpop.f32.mrf.mxu0
      %v1037 = vadd.f32 0.0, %v1036
      %v1038 = vpop.f32.mrf.mxu0
      %1039 = vmatprep.mubr.bf16.mxu0 0
      %1040 = vmatmul.mubr.bf16.gmra.mxu0 %v821
      %v1041 = vpop.f32.mrf.mxu0
      %v1042 = vadd.f32 0.0, %v1041
      %v1043 = vpop.f32.mrf.mxu0
      %v1044 = vpop.f32.mrf.mxu0
      %v1045 = vadd.f32 0.0, %v1044
      %v1046 = vpop.f32.mrf.mxu0
      %1047 = vmatprep.mubr.bf16.mxu0 0
      %1048 = vmatmul.mubr.bf16.gmra.mxu0 %v824
      %v1049 = vpop.f32.mrf.mxu0
      %v1050 = vadd.f32 0.0, %v1049
      %v1051 = vpop.f32.mrf.mxu0
      %v1052 = vpop.f32.mrf.mxu0
      %v1053 = vadd.f32 0.0, %v1052
      %v1054 = vpop.f32.mrf.mxu0
      %1055 = vmatprep.mubr.bf16.mxu0 0
      %1056 = vmatmul.mubr.bf16.gmra.mxu0 %v827
      %v1057 = vpop.f32.mrf.mxu0
      %v1058 = vadd.f32 0.0, %v1057
      %v1059 = vpop.f32.mrf.mxu0
      %v1060 = vpop.f32.mrf.mxu0
      %v1061 = vadd.f32 0.0, %v1060
      %v1062 = vpop.f32.mrf.mxu0
      %1063 = vmatprep.mubr.bf16.mxu0 0
      %1064 = vmatmul.mubr.bf16.gmra.mxu0 %v830
      %v1065 = vpop.f32.mrf.mxu0
      %v1066 = vadd.f32 0.0, %v1065
      %v1067 = vpop.f32.mrf.mxu0
      %v1068 = vpop.f32.mrf.mxu0
      %v1069 = vadd.f32 0.0, %v1068
      %v1070 = vpop.f32.mrf.mxu0
      %1071 = vmatprep.mubr.bf16.mxu0 0
      %1072 = vmatmul.mubr.bf16.gmra.mxu0 %v833
      %v1073 = vpop.f32.mrf.mxu0
      %v1074 = vadd.f32 0.0, %v1073
      %v1075 = vpop.f32.mrf.mxu0
      %v1076 = vpop.f32.mrf.mxu0
      %v1077 = vadd.f32 0.0, %v1076
      %v1078 = vpop.f32.mrf.mxu0
      %1079 = vmatprep.mubr.bf16.mxu0 0
      %1080 = vmatmul.mubr.bf16.gmra.mxu0 %v836
      %v1081 = vpop.f32.mrf.mxu0
      %v1082 = vadd.f32 0.0, %v1081
      %v1083 = vpop.f32.mrf.mxu0
      %v1084 = vpop.f32.mrf.mxu0
      %v1085 = vadd.f32 0.0, %v1084
      %v1086 = vpop.f32.mrf.mxu0
      %1087 = vmatprep.mubr.bf16.mxu0 0
      %1088 = vmatmul.mubr.bf16.gmra.mxu0 %v839
      %v1089 = vpop.f32.mrf.mxu0
      %v1090 = vadd.f32 0.0, %v1089
      %v1091 = vpop.f32.mrf.mxu0
      %v1092 = vpop.f32.mrf.mxu0
      %v1093 = vadd.f32 0.0, %v1092
      %v1094 = vpop.f32.mrf.mxu0
      %1095 = vmatprep.mubr.bf16.mxu0 0
      %1096 = vmatmul.mubr.bf16.gmra.mxu0 %v842
      %v1097 = vpop.f32.mrf.mxu0
      %v1098 = vadd.f32 0.0, %v1097
      %v1099 = vpop.f32.mrf.mxu0
      %v1100 = vpop.f32.mrf.mxu0
      %v1101 = vadd.f32 0.0, %v1100
      %v1102 = vpop.f32.mrf.mxu0
      %1103 = vmatprep.mubr.bf16.mxu0 0
      %1104 = vmatmul.mubr.bf16.gmra.mxu0 %v845
      %v1105 = vpop.f32.mrf.mxu0
      %v1106 = vadd.f32 0.0, %v1105
      %v1107 = vpop.f32.mrf.mxu0
      %v1108 = vpop.f32.mrf.mxu0
      %v1109 = vadd.f32 0.0, %v1108
      %v1110 = vpop.f32.mrf.mxu0
      %1111 = vmatprep.mubr.bf16.mxu0 0
      %1112 = vmatmul.mubr.bf16.gmra.mxu0 %v848
      %v1113 = vpop.f32.mrf.mxu0
      %v1114 = vadd.f32 0.0, %v1113
      %v1115 = vpop.f32.mrf.mxu0
      %v1116 = vpop.f32.mrf.mxu0
      %v1117 = vadd.f32 0.0, %v1116
      %v1118 = vpop.f32.mrf.mxu0
      %1119 = vmatprep.mubr.bf16.mxu0 0
      %1120 = vmatmul.mubr.bf16.gmra.mxu0 %v851
      %v1121 = vpop.f32.mrf.mxu0
      %v1122 = vadd.f32 0.0, %v1121
      %v1123 = vpop.f32.mrf.mxu0
      %v1124 = vpop.f32.mrf.mxu0
      %v1125 = vadd.f32 0.0, %v1124
      %v1126 = vpop.f32.mrf.mxu0
      %1127 = vmatprep.mubr.bf16.mxu0 0
      %1128 = vmatmul.mubr.bf16.gmra.mxu0 %v854
      %v1129 = vpop.f32.mrf.mxu0
      %v1130 = vadd.f32 0.0, %v1129
      %v1131 = vpop.f32.mrf.mxu0
      %v1132 = vpop.f32.mrf.mxu0
      %v1133 = vadd.f32 0.0, %v1132
      %v1134 = vpop.f32.mrf.mxu0
      %1135 = vmatprep.mubr.bf16.mxu0 0
      %1136 = vmatmul.mubr.bf16.gmra.mxu0 %v857
      %v1137 = vpop.f32.mrf.mxu0
      %v1138 = vadd.f32 0.0, %v1137
      %v1139 = vpop.f32.mrf.mxu0
      %v1140 = vpop.f32.mrf.mxu0
      %v1141 = vadd.f32 0.0, %v1140
      %v1142 = vpop.f32.mrf.mxu0
      %1143 = vmatprep.mubr.bf16.mxu0 0
      %1144 = vmatmul.mubr.bf16.gmra.mxu0 %v860
      %v1145 = vpop.f32.mrf.mxu0
      %v1146 = vadd.f32 0.0, %v1145
      %v1147 = vpop.f32.mrf.mxu0
      %v1148 = vpop.f32.mrf.mxu0
      %v1149 = vadd.f32 0.0, %v1148
      %v1150 = vpop.f32.mrf.mxu0
      %1151 = vmatprep.mubr.bf16.mxu0 0
      %1152 = vmatmul.mubr.bf16.gmra.mxu0 %v863
      %v1153 = vpop.f32.mrf.mxu0
      %v1154 = vadd.f32 0.0, %v1153
      %v1155 = vpop.f32.mrf.mxu0
      %v1156 = vpop.f32.mrf.mxu0
      %v1157 = vadd.f32 0.0, %v1156
      %v1158 = vpop.f32.mrf.mxu0
      %1159 = vdwg.mxu0
      %v1160 = vadd.f32 %v516, %v906
      %v1161 = vadd.f32 %v517, %v909
      %v1162 = vadd.f32 %v518, %v914
      %v1163 = vadd.f32 %v519, %v917
      %v1164 = vadd.f32 %v520, %v922
      %v1165 = vadd.f32 %v521, %v925
      %v1166 = vadd.f32 %v522, %v930
      %v1167 = vadd.f32 %v523, %v933
      %v1168 = vadd.f32 %v524, %v938
      %v1169 = vadd.f32 %v525, %v941
      %v1170 = vadd.f32 %v526, %v946
      %v1171 = vadd.f32 %v527, %v949
      %v1172 = vadd.f32 %v528, %v954
      %v1173 = vadd.f32 %v529, %v957
      %v1174 = vadd.f32 %v530, %v962
      %v1175 = vadd.f32 %v531, %v965
      %v1176 = vadd.f32 %v532, %v970
      %v1177 = vadd.f32 %v533, %v973
      %v1178 = vadd.f32 %v534, %v978
      %v1179 = vadd.f32 %v535, %v981
      %v1180 = vadd.f32 %v536, %v986
      %v1181 = vadd.f32 %v537, %v989
      %v1182 = vadd.f32 %v538, %v994
      %v1183 = vadd.f32 %v539, %v997
      %v1184 = vadd.f32 %v540, %v1002
      %v1185 = vadd.f32 %v541, %v1005
      %v1186 = vadd.f32 %v542, %v1010
      %v1187 = vadd.f32 %v543, %v1013
      %v1188 = vadd.f32 %v544, %v1018
      %v1189 = vadd.f32 %v545, %v1021
      %v1190 = vadd.f32 %v546, %v1026
      %v1191 = vadd.f32 %v547, %v1029
      %v1192 = vadd.f32 %v548, %v1034
      %v1193 = vadd.f32 %v549, %v1037
      %v1194 = vadd.f32 %v550, %v1042
      %v1195 = vadd.f32 %v551, %v1045
      %v1196 = vadd.f32 %v552, %v1050
      %v1197 = vadd.f32 %v553, %v1053
      %v1198 = vadd.f32 %v554, %v1058
      %v1199 = vadd.f32 %v555, %v1061
      %v1200 = vadd.f32 %v556, %v1066
      %v1201 = vadd.f32 %v557, %v1069
      %v1202 = vadd.f32 %v558, %v1074
      %v1203 = vadd.f32 %v559, %v1077
      %v1204 = vadd.f32 %v560, %v1082
      %v1205 = vadd.f32 %v561, %v1085
      %v1206 = vadd.f32 %v562, %v1090
      %v1207 = vadd.f32 %v563, %v1093
      %v1208 = vadd.f32 %v564, %v1098
      %v1209 = vadd.f32 %v565, %v1101
      %v1210 = vadd.f32 %v566, %v1106
      %v1211 = vadd.f32 %v567, %v1109
      %v1212 = vadd.f32 %v568, %v1114
      %v1213 = vadd.f32 %v569, %v1117
      %v1214 = vadd.f32 %v570, %v1122
      %v1215 = vadd.f32 %v571, %v1125
      %v1216 = vadd.f32 %v572, %v1130
      %v1217 = vadd.f32 %v573, %v1133
      %v1218 = vadd.f32 %v574, %v1138
      %v1219 = vadd.f32 %v575, %v1141
      %v1220 = vadd.f32 %v576, %v1146
      %v1221 = vadd.f32 %v577, %v1149
      %v1222 = vadd.f32 %v578, %v1154
      %v1223 = vadd.f32 %v579, %v1157
      %vm1224 = vcmask 64512
      %1225 = vst.msk [vmem:[#allocation2] sm:$0xff] %vm1224, %v1160
      %1226 = vst.msk [vmem:[#allocation2 + $0x8] sm:$0xff] %vm1224, %v1161
      %1227 = vst.msk [vmem:[#allocation2 + $0x10] sm:$0xff] %vm1224, %v1162
      %1228 = vst.msk [vmem:[#allocation2 + $0x18] sm:$0xff] %vm1224, %v1163
      %1229 = vst.msk [vmem:[#allocation2 + $0x20] sm:$0xff] %vm1224, %v1164
      %1230 = vst.msk [vmem:[#allocation2 + $0x28] sm:$0xff] %vm1224, %v1165
      %1231 = vst.msk [vmem:[#allocation2 + $0x30] sm:$0xff] %vm1224, %v1166
      %1232 = vst.msk [vmem:[#allocation2 + $0x38] sm:$0xff] %vm1224, %v1167
      %1233 = vst.msk [vmem:[#allocation2 + $0x40] sm:$0xff] %vm1224, %v1168
      %1234 = vst.msk [vmem:[#allocation2 + $0x48] sm:$0xff] %vm1224, %v1169
      %1235 = vst.msk [vmem:[#allocation2 + $0x50] sm:$0xff] %vm1224, %v1170
      %1236 = vst.msk [vmem:[#allocation2 + $0x58] sm:$0xff] %vm1224, %v1171
      %1237 = vst.msk [vmem:[#allocation2 + $0x60] sm:$0xff] %vm1224, %v1172
      %1238 = vst.msk [vmem:[#allocation2 + $0x68] sm:$0xff] %vm1224, %v1173
      %1239 = vst.msk [vmem:[#allocation2 + $0x70] sm:$0xff] %vm1224, %v1174
      %1240 = vst.msk [vmem:[#allocation2 + $0x78] sm:$0xff] %vm1224, %v1175
      %1241 = vst.msk [vmem:[#allocation2 + $0x80] sm:$0xff] %vm1224, %v1176
      %1242 = vst.msk [vmem:[#allocation2 + $0x88] sm:$0xff] %vm1224, %v1177
      %1243 = vst.msk [vmem:[#allocation2 + $0x90] sm:$0xff] %vm1224, %v1178
      %1244 = vst.msk [vmem:[#allocation2 + $0x98] sm:$0xff] %vm1224, %v1179
      %1245 = vst.msk [vmem:[#allocation2 + $0xa0] sm:$0xff] %vm1224, %v1180
      %1246 = vst.msk [vmem:[#allocation2 + $0xa8] sm:$0xff] %vm1224, %v1181
      %1247 = vst.msk [vmem:[#allocation2 + $0xb0] sm:$0xff] %vm1224, %v1182
      %1248 = vst.msk [vmem:[#allocation2 + $0xb8] sm:$0xff] %vm1224, %v1183
      %1249 = vst.msk [vmem:[#allocation2 + $0xc0] sm:$0xff] %vm1224, %v1184
      %1250 = vst.msk [vmem:[#allocation2 + $0xc8] sm:$0xff] %vm1224, %v1185
      %1251 = vst.msk [vmem:[#allocation2 + $0xd0] sm:$0xff] %vm1224, %v1186
      %1252 = vst.msk [vmem:[#allocation2 + $0xd8] sm:$0xff] %vm1224, %v1187
      %1253 = vst.msk [vmem:[#allocation2 + $0xe0] sm:$0xff] %vm1224, %v1188
      %1254 = vst.msk [vmem:[#allocation2 + $0xe8] sm:$0xff] %vm1224, %v1189
      %1255 = vst.msk [vmem:[#allocation2 + $0xf0] sm:$0xff] %vm1224, %v1190
      %1256 = vst.msk [vmem:[#allocation2 + $0xf8] sm:$0xff] %vm1224, %v1191
      %1257 = vst.msk [vmem:[#allocation2 + $0x100] sm:$0xff] %vm1224, %v1192
      %1258 = vst.msk [vmem:[#allocation2 + $0x108] sm:$0xff] %vm1224, %v1193
      %1259 = vst.msk [vmem:[#allocation2 + $0x110] sm:$0xff] %vm1224, %v1194
      %1260 = vst.msk [vmem:[#allocation2 + $0x118] sm:$0xff] %vm1224, %v1195
      %1261 = vst.msk [vmem:[#allocation2 + $0x120] sm:$0xff] %vm1224, %v1196
      %1262 = vst.msk [vmem:[#allocation2 + $0x128] sm:$0xff] %vm1224, %v1197
      %1263 = vst.msk [vmem:[#allocation2 + $0x130] sm:$0xff] %vm1224, %v1198
      %1264 = vst.msk [vmem:[#allocation2 + $0x138] sm:$0xff] %vm1224, %v1199
      %1265 = vst.msk [vmem:[#allocation2 + $0x140] sm:$0xff] %vm1224, %v1200
      %1266 = vst.msk [vmem:[#allocation2 + $0x148] sm:$0xff] %vm1224, %v1201
      %1267 = vst.msk [vmem:[#allocation2 + $0x150] sm:$0xff] %vm1224, %v1202
      %1268 = vst.msk [vmem:[#allocation2 + $0x158] sm:$0xff] %vm1224, %v1203
      %1269 = vst.msk [vmem:[#allocation2 + $0x160] sm:$0xff] %vm1224, %v1204
      %1270 = vst.msk [vmem:[#allocation2 + $0x168] sm:$0xff] %vm1224, %v1205
      %1271 = vst.msk [vmem:[#allocation2 + $0x170] sm:$0xff] %vm1224, %v1206
      %1272 = vst.msk [vmem:[#allocation2 + $0x178] sm:$0xff] %vm1224, %v1207
      %1273 = vst.msk [vmem:[#allocation2 + $0x180] sm:$0xff] %vm1224, %v1208
      %1274 = vst.msk [vmem:[#allocation2 + $0x188] sm:$0xff] %vm1224, %v1209
      %1275 = vst.msk [vmem:[#allocation2 + $0x190] sm:$0xff] %vm1224, %v1210
      %1276 = vst.msk [vmem:[#allocation2 + $0x198] sm:$0xff] %vm1224, %v1211
      %1277 = vst.msk [vmem:[#allocation2 + $0x1a0] sm:$0xff] %vm1224, %v1212
      %1278 = vst.msk [vmem:[#allocation2 + $0x1a8] sm:$0xff] %vm1224, %v1213
      %1279 = vst.msk [vmem:[#allocation2 + $0x1b0] sm:$0xff] %vm1224, %v1214
      %1280 = vst.msk [vmem:[#allocation2 + $0x1b8] sm:$0xff] %vm1224, %v1215
      %1281 = vst.msk [vmem:[#allocation2 + $0x1c0] sm:$0xff] %vm1224, %v1216
      %1282 = vst.msk [vmem:[#allocation2 + $0x1c8] sm:$0xff] %vm1224, %v1217
      %1283 = vst.msk [vmem:[#allocation2 + $0x1d0] sm:$0xff] %vm1224, %v1218
      %1284 = vst.msk [vmem:[#allocation2 + $0x1d8] sm:$0xff] %vm1224, %v1219
      %1285 = vst.msk [vmem:[#allocation2 + $0x1e0] sm:$0xff] %vm1224, %v1220
      %1286 = vst.msk [vmem:[#allocation2 + $0x1e8] sm:$0xff] %vm1224, %v1221
      %1287 = vst.msk [vmem:[#allocation2 + $0x1f0] sm:$0xff] %vm1224, %v1222
      %1288 = vst.msk [vmem:[#allocation2 + $0x1f8] sm:$0xff] %vm1224, %v1223
      // Predicated region
      $region49: #{fused_matmul.1} parent=43 // pred_check
        %p1289 = pneg %p383
      $region50: #{fused_matmul.1} parent=43 // pred_check_branch
        %1291 = sbr.rel (%p1289) target = $region52
      $region51: #{fused_matmul.1} parent=43 // pred_region
        %v1292 = vld [vmem:[#allocation2] sm:$0xff]
        %v1293 = vld [vmem:[#allocation2 + $0x8] sm:$0xff]
        %v1294 = vld [vmem:[#allocation2 + $0x10] sm:$0xff]
        %v1295 = vld [vmem:[#allocation2 + $0x18] sm:$0xff]
        %v1296 = vld [vmem:[#allocation2 + $0x20] sm:$0xff]
        %v1297 = vld [vmem:[#allocation2 + $0x28] sm:$0xff]
        %v1298 = vld [vmem:[#allocation2 + $0x30] sm:$0xff]
        %v1299 = vld [vmem:[#allocation2 + $0x38] sm:$0xff]
        %v1300 = vld [vmem:[#allocation2 + $0x40] sm:$0xff]
        %v1301 = vld [vmem:[#allocation2 + $0x48] sm:$0xff]
        %v1302 = vld [vmem:[#allocation2 + $0x50] sm:$0xff]
        %v1303 = vld [vmem:[#allocation2 + $0x58] sm:$0xff]
        %v1304 = vld [vmem:[#allocation2 + $0x60] sm:$0xff]
        %v1305 = vld [vmem:[#allocation2 + $0x68] sm:$0xff]
        %v1306 = vld [vmem:[#allocation2 + $0x70] sm:$0xff]
        %v1307 = vld [vmem:[#allocation2 + $0x78] sm:$0xff]
        %v1308 = vld [vmem:[#allocation2 + $0x80] sm:$0xff]
        %v1309 = vld [vmem:[#allocation2 + $0x88] sm:$0xff]
        %v1310 = vld [vmem:[#allocation2 + $0x90] sm:$0xff]
        %v1311 = vld [vmem:[#allocation2 + $0x98] sm:$0xff]
        %v1312 = vld [vmem:[#allocation2 + $0xa0] sm:$0xff]
        %v1313 = vld [vmem:[#allocation2 + $0xa8] sm:$0xff]
        %v1314 = vld [vmem:[#allocation2 + $0xb0] sm:$0xff]
        %v1315 = vld [vmem:[#allocation2 + $0xb8] sm:$0xff]
        %v1316 = vld [vmem:[#allocation2 + $0xc0] sm:$0xff]
        %v1317 = vld [vmem:[#allocation2 + $0xc8] sm:$0xff]
        %v1318 = vld [vmem:[#allocation2 + $0xd0] sm:$0xff]
        %v1319 = vld [vmem:[#allocation2 + $0xd8] sm:$0xff]
        %v1320 = vld [vmem:[#allocation2 + $0xe0] sm:$0xff]
        %v1321 = vld [vmem:[#allocation2 + $0xe8] sm:$0xff]
        %v1322 = vld [vmem:[#allocation2 + $0xf0] sm:$0xff]
        %v1323 = vld [vmem:[#allocation2 + $0xf8] sm:$0xff]
        %v1324 = vld [vmem:[#allocation2 + $0x100] sm:$0xff]
        %v1325 = vld [vmem:[#allocation2 + $0x108] sm:$0xff]
        %v1326 = vld [vmem:[#allocation2 + $0x110] sm:$0xff]
        %v1327 = vld [vmem:[#allocation2 + $0x118] sm:$0xff]
        %v1328 = vld [vmem:[#allocation2 + $0x120] sm:$0xff]
        %v1329 = vld [vmem:[#allocation2 + $0x128] sm:$0xff]
        %v1330 = vld [vmem:[#allocation2 + $0x130] sm:$0xff]
        %v1331 = vld [vmem:[#allocation2 + $0x138] sm:$0xff]
        %v1332 = vld [vmem:[#allocation2 + $0x140] sm:$0xff]
        %v1333 = vld [vmem:[#allocation2 + $0x148] sm:$0xff]
        %v1334 = vld [vmem:[#allocation2 + $0x150] sm:$0xff]
        %v1335 = vld [vmem:[#allocation2 + $0x158] sm:$0xff]
        %v1336 = vld [vmem:[#allocation2 + $0x160] sm:$0xff]
        %v1337 = vld [vmem:[#allocation2 + $0x168] sm:$0xff]
        %v1338 = vld [vmem:[#allocation2 + $0x170] sm:$0xff]
        %v1339 = vld [vmem:[#allocation2 + $0x178] sm:$0xff]
        %v1340 = vld [vmem:[#allocation2 + $0x180] sm:$0xff]
        %v1341 = vld [vmem:[#allocation2 + $0x188] sm:$0xff]
        %v1342 = vld [vmem:[#allocation2 + $0x190] sm:$0xff]
        %v1343 = vld [vmem:[#allocation2 + $0x198] sm:$0xff]
        %v1344 = vld [vmem:[#allocation2 + $0x1a0] sm:$0xff]
        %v1345 = vld [vmem:[#allocation2 + $0x1a8] sm:$0xff]
        %v1346 = vld [vmem:[#allocation2 + $0x1b0] sm:$0xff]
        %v1347 = vld [vmem:[#allocation2 + $0x1b8] sm:$0xff]
        %v1348 = vld [vmem:[#allocation2 + $0x1c0] sm:$0xff]
        %v1349 = vld [vmem:[#allocation2 + $0x1c8] sm:$0xff]
        %v1350 = vld [vmem:[#allocation2 + $0x1d0] sm:$0xff]
        %v1351 = vld [vmem:[#allocation2 + $0x1d8] sm:$0xff]
        %v1352 = vld [vmem:[#allocation2 + $0x1e0] sm:$0xff]
        %v1353 = vld [vmem:[#allocation2 + $0x1e8] sm:$0xff]
        %v1354 = vld [vmem:[#allocation2 + $0x1f0] sm:$0xff]
        %v1355 = vld [vmem:[#allocation2 + $0x1f8] sm:$0xff]
        %v1356 = vld [vmem:[%s363] sm:$0x1]
        %v1358 = vlaneseq
        %v1359 = vshrl.u32 %v1358, 7
        %v1360 = vsub.s32 0, %v1359
        %v1361 = vrot.slane %v1356, %v1360
        %v1363 = vmul.f32 %v1292, %v1361
        %v1364 = vmul.f32 %v1293, %v1361
        %v1365 = vmul.f32 %v1294, %v1361
        %v1366 = vmul.f32 %v1295, %v1361
        %v1367 = vmul.f32 %v1296, %v1361
        %v1368 = vmul.f32 %v1297, %v1361
        %v1369 = vmul.f32 %v1298, %v1361
        %v1370 = vmul.f32 %v1299, %v1361
        %v1371 = vmul.f32 %v1300, %v1361
        %v1372 = vmul.f32 %v1301, %v1361
        %v1373 = vmul.f32 %v1302, %v1361
        %v1374 = vmul.f32 %v1303, %v1361
        %v1375 = vmul.f32 %v1304, %v1361
        %v1376 = vmul.f32 %v1305, %v1361
        %v1377 = vmul.f32 %v1306, %v1361
        %v1378 = vmul.f32 %v1307, %v1361
        %v1379 = vmul.f32 %v1308, %v1361
        %v1380 = vmul.f32 %v1309, %v1361
        %v1381 = vmul.f32 %v1310, %v1361
        %v1382 = vmul.f32 %v1311, %v1361
        %v1383 = vmul.f32 %v1312, %v1361
        %v1384 = vmul.f32 %v1313, %v1361
        %v1385 = vmul.f32 %v1314, %v1361
        %v1386 = vmul.f32 %v1315, %v1361
        %v1387 = vmul.f32 %v1316, %v1361
        %v1388 = vmul.f32 %v1317, %v1361
        %v1389 = vmul.f32 %v1318, %v1361
        %v1390 = vmul.f32 %v1319, %v1361
        %v1391 = vmul.f32 %v1320, %v1361
        %v1392 = vmul.f32 %v1321, %v1361
        %v1393 = vmul.f32 %v1322, %v1361
        %v1394 = vmul.f32 %v1323, %v1361
        %v1395 = vmul.f32 %v1324, %v1361
        %v1396 = vmul.f32 %v1325, %v1361
        %v1397 = vmul.f32 %v1326, %v1361
        %v1398 = vmul.f32 %v1327, %v1361
        %v1399 = vmul.f32 %v1328, %v1361
        %v1400 = vmul.f32 %v1329, %v1361
        %v1401 = vmul.f32 %v1330, %v1361
        %v1402 = vmul.f32 %v1331, %v1361
        %v1403 = vmul.f32 %v1332, %v1361
        %v1404 = vmul.f32 %v1333, %v1361
        %v1405 = vmul.f32 %v1334, %v1361
        %v1406 = vmul.f32 %v1335, %v1361
        %v1407 = vmul.f32 %v1336, %v1361
        %v1408 = vmul.f32 %v1337, %v1361
        %v1409 = vmul.f32 %v1338, %v1361
        %v1410 = vmul.f32 %v1339, %v1361
        %v1411 = vmul.f32 %v1340, %v1361
        %v1412 = vmul.f32 %v1341, %v1361
        %v1413 = vmul.f32 %v1342, %v1361
        %v1414 = vmul.f32 %v1343, %v1361
        %v1415 = vmul.f32 %v1344, %v1361
        %v1416 = vmul.f32 %v1345, %v1361
        %v1417 = vmul.f32 %v1346, %v1361
        %v1418 = vmul.f32 %v1347, %v1361
        %v1419 = vmul.f32 %v1348, %v1361
        %v1420 = vmul.f32 %v1349, %v1361
        %v1421 = vmul.f32 %v1350, %v1361
        %v1422 = vmul.f32 %v1351, %v1361
        %v1423 = vmul.f32 %v1352, %v1361
        %v1424 = vmul.f32 %v1353, %v1361
        %v1425 = vmul.f32 %v1354, %v1361
        %v1426 = vmul.f32 %v1355, %v1361
        %v1427 = vld [vmem:[%s366] sm:$0x1]
        %v1429 = vlaneseq
        %v1430 = vshrl.u32 %v1429, 7
        %v1431 = vsub.s32 0, %v1430
        %v1432 = vrot.slane %v1427, %v1431
        %v1434 = vadd.f32 %v1363, %v1432
        %v1435 = vadd.f32 %v1364, %v1432
        %v1436 = vadd.f32 %v1365, %v1432
        %v1437 = vadd.f32 %v1366, %v1432
        %v1438 = vadd.f32 %v1367, %v1432
        %v1439 = vadd.f32 %v1368, %v1432
        %v1440 = vadd.f32 %v1369, %v1432
        %v1441 = vadd.f32 %v1370, %v1432
        %v1442 = vadd.f32 %v1371, %v1432
        %v1443 = vadd.f32 %v1372, %v1432
        %v1444 = vadd.f32 %v1373, %v1432
        %v1445 = vadd.f32 %v1374, %v1432
        %v1446 = vadd.f32 %v1375, %v1432
        %v1447 = vadd.f32 %v1376, %v1432
        %v1448 = vadd.f32 %v1377, %v1432
        %v1449 = vadd.f32 %v1378, %v1432
        %v1450 = vadd.f32 %v1379, %v1432
        %v1451 = vadd.f32 %v1380, %v1432
        %v1452 = vadd.f32 %v1381, %v1432
        %v1453 = vadd.f32 %v1382, %v1432
        %v1454 = vadd.f32 %v1383, %v1432
        %v1455 = vadd.f32 %v1384, %v1432
        %v1456 = vadd.f32 %v1385, %v1432
        %v1457 = vadd.f32 %v1386, %v1432
        %v1458 = vadd.f32 %v1387, %v1432
        %v1459 = vadd.f32 %v1388, %v1432
        %v1460 = vadd.f32 %v1389, %v1432
        %v1461 = vadd.f32 %v1390, %v1432
        %v1462 = vadd.f32 %v1391, %v1432
        %v1463 = vadd.f32 %v1392, %v1432
        %v1464 = vadd.f32 %v1393, %v1432
        %v1465 = vadd.f32 %v1394, %v1432
        %v1466 = vadd.f32 %v1395, %v1432
        %v1467 = vadd.f32 %v1396, %v1432
        %v1468 = vadd.f32 %v1397, %v1432
        %v1469 = vadd.f32 %v1398, %v1432
        %v1470 = vadd.f32 %v1399, %v1432
        %v1471 = vadd.f32 %v1400, %v1432
        %v1472 = vadd.f32 %v1401, %v1432
        %v1473 = vadd.f32 %v1402, %v1432
        %v1474 = vadd.f32 %v1403, %v1432
        %v1475 = vadd.f32 %v1404, %v1432
        %v1476 = vadd.f32 %v1405, %v1432
        %v1477 = vadd.f32 %v1406, %v1432
        %v1478 = vadd.f32 %v1407, %v1432
        %v1479 = vadd.f32 %v1408, %v1432
        %v1480 = vadd.f32 %v1409, %v1432
        %v1481 = vadd.f32 %v1410, %v1432
        %v1482 = vadd.f32 %v1411, %v1432
        %v1483 = vadd.f32 %v1412, %v1432
        %v1484 = vadd.f32 %v1413, %v1432
        %v1485 = vadd.f32 %v1414, %v1432
        %v1486 = vadd.f32 %v1415, %v1432
        %v1487 = vadd.f32 %v1416, %v1432
        %v1488 = vadd.f32 %v1417, %v1432
        %v1489 = vadd.f32 %v1418, %v1432
        %v1490 = vadd.f32 %v1419, %v1432
        %v1491 = vadd.f32 %v1420, %v1432
        %v1492 = vadd.f32 %v1421, %v1432
        %v1493 = vadd.f32 %v1422, %v1432
        %v1494 = vadd.f32 %v1423, %v1432
        %v1495 = vadd.f32 %v1424, %v1432
        %v1496 = vadd.f32 %v1425, %v1432
        %v1497 = vadd.f32 %v1426, %v1432
        %v1498 = vmax.f32 %v1434, 0.0
        %v1499 = vmax.f32 %v1435, 0.0
        %v1500 = vmax.f32 %v1436, 0.0
        %v1501 = vmax.f32 %v1437, 0.0
        %v1502 = vmax.f32 %v1438, 0.0
        %v1503 = vmax.f32 %v1439, 0.0
        %v1504 = vmax.f32 %v1440, 0.0
        %v1505 = vmax.f32 %v1441, 0.0
        %v1506 = vmax.f32 %v1442, 0.0
        %v1507 = vmax.f32 %v1443, 0.0
        %v1508 = vmax.f32 %v1444, 0.0
        %v1509 = vmax.f32 %v1445, 0.0
        %v1510 = vmax.f32 %v1446, 0.0
        %v1511 = vmax.f32 %v1447, 0.0
        %v1512 = vmax.f32 %v1448, 0.0
        %v1513 = vmax.f32 %v1449, 0.0
        %v1514 = vmax.f32 %v1450, 0.0
        %v1515 = vmax.f32 %v1451, 0.0
        %v1516 = vmax.f32 %v1452, 0.0
        %v1517 = vmax.f32 %v1453, 0.0
        %v1518 = vmax.f32 %v1454, 0.0
        %v1519 = vmax.f32 %v1455, 0.0
        %v1520 = vmax.f32 %v1456, 0.0
        %v1521 = vmax.f32 %v1457, 0.0
        %v1522 = vmax.f32 %v1458, 0.0
        %v1523 = vmax.f32 %v1459, 0.0
        %v1524 = vmax.f32 %v1460, 0.0
        %v1525 = vmax.f32 %v1461, 0.0
        %v1526 = vmax.f32 %v1462, 0.0
        %v1527 = vmax.f32 %v1463, 0.0
        %v1528 = vmax.f32 %v1464, 0.0
        %v1529 = vmax.f32 %v1465, 0.0
        %v1530 = vmax.f32 %v1466, 0.0
        %v1531 = vmax.f32 %v1467, 0.0
        %v1532 = vmax.f32 %v1468, 0.0
        %v1533 = vmax.f32 %v1469, 0.0
        %v1534 = vmax.f32 %v1470, 0.0
        %v1535 = vmax.f32 %v1471, 0.0
        %v1536 = vmax.f32 %v1472, 0.0
        %v1537 = vmax.f32 %v1473, 0.0
        %v1538 = vmax.f32 %v1474, 0.0
        %v1539 = vmax.f32 %v1475, 0.0
        %v1540 = vmax.f32 %v1476, 0.0
        %v1541 = vmax.f32 %v1477, 0.0
        %v1542 = vmax.f32 %v1478, 0.0
        %v1543 = vmax.f32 %v1479, 0.0
        %v1544 = vmax.f32 %v1480, 0.0
        %v1545 = vmax.f32 %v1481, 0.0
        %v1546 = vmax.f32 %v1482, 0.0
        %v1547 = vmax.f32 %v1483, 0.0
        %v1548 = vmax.f32 %v1484, 0.0
        %v1549 = vmax.f32 %v1485, 0.0
        %v1550 = vmax.f32 %v1486, 0.0
        %v1551 = vmax.f32 %v1487, 0.0
        %v1552 = vmax.f32 %v1488, 0.0
        %v1553 = vmax.f32 %v1489, 0.0
        %v1554 = vmax.f32 %v1490, 0.0
        %v1555 = vmax.f32 %v1491, 0.0
        %v1556 = vmax.f32 %v1492, 0.0
        %v1557 = vmax.f32 %v1493, 0.0
        %v1558 = vmax.f32 %v1494, 0.0
        %v1559 = vmax.f32 %v1495, 0.0
        %v1560 = vmax.f32 %v1496, 0.0
        %v1561 = vmax.f32 %v1497, 0.0
        %v1562 = vld [vmem:[%s369] sm:$0x1]
        %v1564 = vlaneseq
        %v1565 = vshrl.u32 %v1564, 7
        %v1566 = vsub.s32 0, %v1565
        %v1567 = vrot.slane %v1562, %v1566
        %v1569 = vmul.f32 %v1498, %v1567
        %v1570 = vmul.f32 %v1499, %v1567
        %v1571 = vmul.f32 %v1500, %v1567
        %v1572 = vmul.f32 %v1501, %v1567
        %v1573 = vmul.f32 %v1502, %v1567
        %v1574 = vmul.f32 %v1503, %v1567
        %v1575 = vmul.f32 %v1504, %v1567
        %v1576 = vmul.f32 %v1505, %v1567
        %v1577 = vmul.f32 %v1506, %v1567
        %v1578 = vmul.f32 %v1507, %v1567
        %v1579 = vmul.f32 %v1508, %v1567
        %v1580 = vmul.f32 %v1509, %v1567
        %v1581 = vmul.f32 %v1510, %v1567
        %v1582 = vmul.f32 %v1511, %v1567
        %v1583 = vmul.f32 %v1512, %v1567
        %v1584 = vmul.f32 %v1513, %v1567
        %v1585 = vmul.f32 %v1514, %v1567
        %v1586 = vmul.f32 %v1515, %v1567
        %v1587 = vmul.f32 %v1516, %v1567
        %v1588 = vmul.f32 %v1517, %v1567
        %v1589 = vmul.f32 %v1518, %v1567
        %v1590 = vmul.f32 %v1519, %v1567
        %v1591 = vmul.f32 %v1520, %v1567
        %v1592 = vmul.f32 %v1521, %v1567
        %v1593 = vmul.f32 %v1522, %v1567
        %v1594 = vmul.f32 %v1523, %v1567
        %v1595 = vmul.f32 %v1524, %v1567
        %v1596 = vmul.f32 %v1525, %v1567
        %v1597 = vmul.f32 %v1526, %v1567
        %v1598 = vmul.f32 %v1527, %v1567
        %v1599 = vmul.f32 %v1528, %v1567
        %v1600 = vmul.f32 %v1529, %v1567
        %v1601 = vmul.f32 %v1530, %v1567
        %v1602 = vmul.f32 %v1531, %v1567
        %v1603 = vmul.f32 %v1532, %v1567
        %v1604 = vmul.f32 %v1533, %v1567
        %v1605 = vmul.f32 %v1534, %v1567
        %v1606 = vmul.f32 %v1535, %v1567
        %v1607 = vmul.f32 %v1536, %v1567
        %v1608 = vmul.f32 %v1537, %v1567
        %v1609 = vmul.f32 %v1538, %v1567
        %v1610 = vmul.f32 %v1539, %v1567
        %v1611 = vmul.f32 %v1540, %v1567
        %v1612 = vmul.f32 %v1541, %v1567
        %v1613 = vmul.f32 %v1542, %v1567
        %v1614 = vmul.f32 %v1543, %v1567
        %v1615 = vmul.f32 %v1544, %v1567
        %v1616 = vmul.f32 %v1545, %v1567
        %v1617 = vmul.f32 %v1546, %v1567
        %v1618 = vmul.f32 %v1547, %v1567
        %v1619 = vmul.f32 %v1548, %v1567
        %v1620 = vmul.f32 %v1549, %v1567
        %v1621 = vmul.f32 %v1550, %v1567
        %v1622 = vmul.f32 %v1551, %v1567
        %v1623 = vmul.f32 %v1552, %v1567
        %v1624 = vmul.f32 %v1553, %v1567
        %v1625 = vmul.f32 %v1554, %v1567
        %v1626 = vmul.f32 %v1555, %v1567
        %v1627 = vmul.f32 %v1556, %v1567
        %v1628 = vmul.f32 %v1557, %v1567
        %v1629 = vmul.f32 %v1558, %v1567
        %v1630 = vmul.f32 %v1559, %v1567
        %v1631 = vmul.f32 %v1560, %v1567
        %v1632 = vmul.f32 %v1561, %v1567
        %v1633 = vld [vmem:[%s372] sm:$0x1]
        %v1635 = vlaneseq
        %v1636 = vshrl.u32 %v1635, 7
        %v1637 = vsub.s32 0, %v1636
        %v1638 = vrot.slane %v1633, %v1637
        %v1640 = vadd.f32 %v1569, %v1638
        %v1641 = vadd.f32 %v1570, %v1638
        %v1642 = vadd.f32 %v1571, %v1638
        %v1643 = vadd.f32 %v1572, %v1638
        %v1644 = vadd.f32 %v1573, %v1638
        %v1645 = vadd.f32 %v1574, %v1638
        %v1646 = vadd.f32 %v1575, %v1638
        %v1647 = vadd.f32 %v1576, %v1638
        %v1648 = vadd.f32 %v1577, %v1638
        %v1649 = vadd.f32 %v1578, %v1638
        %v1650 = vadd.f32 %v1579, %v1638
        %v1651 = vadd.f32 %v1580, %v1638
        %v1652 = vadd.f32 %v1581, %v1638
        %v1653 = vadd.f32 %v1582, %v1638
        %v1654 = vadd.f32 %v1583, %v1638
        %v1655 = vadd.f32 %v1584, %v1638
        %v1656 = vadd.f32 %v1585, %v1638
        %v1657 = vadd.f32 %v1586, %v1638
        %v1658 = vadd.f32 %v1587, %v1638
        %v1659 = vadd.f32 %v1588, %v1638
        %v1660 = vadd.f32 %v1589, %v1638
        %v1661 = vadd.f32 %v1590, %v1638
        %v1662 = vadd.f32 %v1591, %v1638
        %v1663 = vadd.f32 %v1592, %v1638
        %v1664 = vadd.f32 %v1593, %v1638
        %v1665 = vadd.f32 %v1594, %v1638
        %v1666 = vadd.f32 %v1595, %v1638
        %v1667 = vadd.f32 %v1596, %v1638
        %v1668 = vadd.f32 %v1597, %v1638
        %v1669 = vadd.f32 %v1598, %v1638
        %v1670 = vadd.f32 %v1599, %v1638
        %v1671 = vadd.f32 %v1600, %v1638
        %v1672 = vadd.f32 %v1601, %v1638
        %v1673 = vadd.f32 %v1602, %v1638
        %v1674 = vadd.f32 %v1603, %v1638
        %v1675 = vadd.f32 %v1604, %v1638
        %v1676 = vadd.f32 %v1605, %v1638
        %v1677 = vadd.f32 %v1606, %v1638
        %v1678 = vadd.f32 %v1607, %v1638
        %v1679 = vadd.f32 %v1608, %v1638
        %v1680 = vadd.f32 %v1609, %v1638
        %v1681 = vadd.f32 %v1610, %v1638
        %v1682 = vadd.f32 %v1611, %v1638
        %v1683 = vadd.f32 %v1612, %v1638
        %v1684 = vadd.f32 %v1613, %v1638
        %v1685 = vadd.f32 %v1614, %v1638
        %v1686 = vadd.f32 %v1615, %v1638
        %v1687 = vadd.f32 %v1616, %v1638
        %v1688 = vadd.f32 %v1617, %v1638
        %v1689 = vadd.f32 %v1618, %v1638
        %v1690 = vadd.f32 %v1619, %v1638
        %v1691 = vadd.f32 %v1620, %v1638
        %v1692 = vadd.f32 %v1621, %v1638
        %v1693 = vadd.f32 %v1622, %v1638
        %v1694 = vadd.f32 %v1623, %v1638
        %v1695 = vadd.f32 %v1624, %v1638
        %v1696 = vadd.f32 %v1625, %v1638
        %v1697 = vadd.f32 %v1626, %v1638
        %v1698 = vadd.f32 %v1627, %v1638
        %v1699 = vadd.f32 %v1628, %v1638
        %v1700 = vadd.f32 %v1629, %v1638
        %v1701 = vadd.f32 %v1630, %v1638
        %v1702 = vadd.f32 %v1631, %v1638
        %v1703 = vadd.f32 %v1632, %v1638
        %v1704 = vmax.f32 %v1640, 0.0
        %v1705 = vmax.f32 %v1641, 0.0
        %v1706 = vmax.f32 %v1642, 0.0
        %v1707 = vmax.f32 %v1643, 0.0
        %v1708 = vmax.f32 %v1644, 0.0
        %v1709 = vmax.f32 %v1645, 0.0
        %v1710 = vmax.f32 %v1646, 0.0
        %v1711 = vmax.f32 %v1647, 0.0
        %v1712 = vmax.f32 %v1648, 0.0
        %v1713 = vmax.f32 %v1649, 0.0
        %v1714 = vmax.f32 %v1650, 0.0
        %v1715 = vmax.f32 %v1651, 0.0
        %v1716 = vmax.f32 %v1652, 0.0
        %v1717 = vmax.f32 %v1653, 0.0
        %v1718 = vmax.f32 %v1654, 0.0
        %v1719 = vmax.f32 %v1655, 0.0
        %v1720 = vmax.f32 %v1656, 0.0
        %v1721 = vmax.f32 %v1657, 0.0
        %v1722 = vmax.f32 %v1658, 0.0
        %v1723 = vmax.f32 %v1659, 0.0
        %v1724 = vmax.f32 %v1660, 0.0
        %v1725 = vmax.f32 %v1661, 0.0
        %v1726 = vmax.f32 %v1662, 0.0
        %v1727 = vmax.f32 %v1663, 0.0
        %v1728 = vmax.f32 %v1664, 0.0
        %v1729 = vmax.f32 %v1665, 0.0
        %v1730 = vmax.f32 %v1666, 0.0
        %v1731 = vmax.f32 %v1667, 0.0
        %v1732 = vmax.f32 %v1668, 0.0
        %v1733 = vmax.f32 %v1669, 0.0
        %v1734 = vmax.f32 %v1670, 0.0
        %v1735 = vmax.f32 %v1671, 0.0
        %v1736 = vmax.f32 %v1672, 0.0
        %v1737 = vmax.f32 %v1673, 0.0
        %v1738 = vmax.f32 %v1674, 0.0
        %v1739 = vmax.f32 %v1675, 0.0
        %v1740 = vmax.f32 %v1676, 0.0
        %v1741 = vmax.f32 %v1677, 0.0
        %v1742 = vmax.f32 %v1678, 0.0
        %v1743 = vmax.f32 %v1679, 0.0
        %v1744 = vmax.f32 %v1680, 0.0
        %v1745 = vmax.f32 %v1681, 0.0
        %v1746 = vmax.f32 %v1682, 0.0
        %v1747 = vmax.f32 %v1683, 0.0
        %v1748 = vmax.f32 %v1684, 0.0
        %v1749 = vmax.f32 %v1685, 0.0
        %v1750 = vmax.f32 %v1686, 0.0
        %v1751 = vmax.f32 %v1687, 0.0
        %v1752 = vmax.f32 %v1688, 0.0
        %v1753 = vmax.f32 %v1689, 0.0
        %v1754 = vmax.f32 %v1690, 0.0
        %v1755 = vmax.f32 %v1691, 0.0
        %v1756 = vmax.f32 %v1692, 0.0
        %v1757 = vmax.f32 %v1693, 0.0
        %v1758 = vmax.f32 %v1694, 0.0
        %v1759 = vmax.f32 %v1695, 0.0
        %v1760 = vmax.f32 %v1696, 0.0
        %v1761 = vmax.f32 %v1697, 0.0
        %v1762 = vmax.f32 %v1698, 0.0
        %v1763 = vmax.f32 %v1699, 0.0
        %v1764 = vmax.f32 %v1700, 0.0
        %v1765 = vmax.f32 %v1701, 0.0
        %v1766 = vmax.f32 %v1702, 0.0
        %v1767 = vmax.f32 %v1703, 0.0
        %v1768 = vpack.c.bf16 %v1705, %v1704
        %v1769 = vpack.c.bf16 %v1707, %v1706
        %v1770 = vpack.c.bf16 %v1709, %v1708
        %v1771 = vpack.c.bf16 %v1711, %v1710
        %v1772 = vpack.c.bf16 %v1713, %v1712
        %v1773 = vpack.c.bf16 %v1715, %v1714
        %v1774 = vpack.c.bf16 %v1717, %v1716
        %v1775 = vpack.c.bf16 %v1719, %v1718
        %v1776 = vpack.c.bf16 %v1721, %v1720
        %v1777 = vpack.c.bf16 %v1723, %v1722
        %v1778 = vpack.c.bf16 %v1725, %v1724
        %v1779 = vpack.c.bf16 %v1727, %v1726
        %v1780 = vpack.c.bf16 %v1729, %v1728
        %v1781 = vpack.c.bf16 %v1731, %v1730
        %v1782 = vpack.c.bf16 %v1733, %v1732
        %v1783 = vpack.c.bf16 %v1735, %v1734
        %v1784 = vpack.c.bf16 %v1737, %v1736
        %v1785 = vpack.c.bf16 %v1739, %v1738
        %v1786 = vpack.c.bf16 %v1741, %v1740
        %v1787 = vpack.c.bf16 %v1743, %v1742
        %v1788 = vpack.c.bf16 %v1745, %v1744
        %v1789 = vpack.c.bf16 %v1747, %v1746
        %v1790 = vpack.c.bf16 %v1749, %v1748
        %v1791 = vpack.c.bf16 %v1751, %v1750
        %v1792 = vpack.c.bf16 %v1753, %v1752
        %v1793 = vpack.c.bf16 %v1755, %v1754
        %v1794 = vpack.c.bf16 %v1757, %v1756
        %v1795 = vpack.c.bf16 %v1759, %v1758
        %v1796 = vpack.c.bf16 %v1761, %v1760
        %v1797 = vpack.c.bf16 %v1763, %v1762
        %v1798 = vpack.c.bf16 %v1765, %v1764
        %v1799 = vpack.c.bf16 %v1767, %v1766
        %v1832 = vunpack.c.l.b16 %v1768
        %v1833 = vunpack.c.h.b16 %v1768
        %v1834 = vunpack.c.l.b16 %v1769
        %v1835 = vunpack.c.h.b16 %v1769
        %v1836 = vunpack.c.l.b16 %v1770
        %v1837 = vunpack.c.h.b16 %v1770
        %v1838 = vunpack.c.l.b16 %v1771
        %v1839 = vunpack.c.h.b16 %v1771
        %v1840 = vunpack.c.l.b16 %v1772
        %v1841 = vunpack.c.h.b16 %v1772
        %v1842 = vunpack.c.l.b16 %v1773
        %v1843 = vunpack.c.h.b16 %v1773
        %v1844 = vunpack.c.l.b16 %v1774
        %v1845 = vunpack.c.h.b16 %v1774
        %v1846 = vunpack.c.l.b16 %v1775
        %v1847 = vunpack.c.h.b16 %v1775
        %v1848 = vunpack.c.l.b16 %v1776
        %v1849 = vunpack.c.h.b16 %v1776
        %v1850 = vunpack.c.l.b16 %v1777
        %v1851 = vunpack.c.h.b16 %v1777
        %v1852 = vunpack.c.l.b16 %v1778
        %v1853 = vunpack.c.h.b16 %v1778
        %v1854 = vunpack.c.l.b16 %v1779
        %v1855 = vunpack.c.h.b16 %v1779
        %v1856 = vunpack.c.l.b16 %v1780
        %v1857 = vunpack.c.h.b16 %v1780
        %v1858 = vunpack.c.l.b16 %v1781
        %v1859 = vunpack.c.h.b16 %v1781
        %v1860 = vunpack.c.l.b16 %v1782
        %v1861 = vunpack.c.h.b16 %v1782
        %v1862 = vunpack.c.l.b16 %v1783
        %v1863 = vunpack.c.h.b16 %v1783
        %v1864 = vunpack.c.l.b16 %v1784
        %v1865 = vunpack.c.h.b16 %v1784
        %v1866 = vunpack.c.l.b16 %v1785
        %v1867 = vunpack.c.h.b16 %v1785
        %v1868 = vunpack.c.l.b16 %v1786
        %v1869 = vunpack.c.h.b16 %v1786
        %v1870 = vunpack.c.l.b16 %v1787
        %v1871 = vunpack.c.h.b16 %v1787
        %v1872 = vunpack.c.l.b16 %v1788
        %v1873 = vunpack.c.h.b16 %v1788
        %v1874 = vunpack.c.l.b16 %v1789
        %v1875 = vunpack.c.h.b16 %v1789
        %v1876 = vunpack.c.l.b16 %v1790
        %v1877 = vunpack.c.h.b16 %v1790
        %v1878 = vunpack.c.l.b16 %v1791
        %v1879 = vunpack.c.h.b16 %v1791
        %v1880 = vunpack.c.l.b16 %v1792
        %v1881 = vunpack.c.h.b16 %v1792
        %v1882 = vunpack.c.l.b16 %v1793
        %v1883 = vunpack.c.h.b16 %v1793
        %v1884 = vunpack.c.l.b16 %v1794
        %v1885 = vunpack.c.h.b16 %v1794
        %v1886 = vunpack.c.l.b16 %v1795
        %v1887 = vunpack.c.h.b16 %v1795
        %v1888 = vunpack.c.l.b16 %v1796
        %v1889 = vunpack.c.h.b16 %v1796
        %v1890 = vunpack.c.l.b16 %v1797
        %v1891 = vunpack.c.h.b16 %v1797
        %v1892 = vunpack.c.l.b16 %v1798
        %v1893 = vunpack.c.h.b16 %v1798
        %v1894 = vunpack.c.l.b16 %v1799
        %v1895 = vunpack.c.h.b16 %v1799
        %v1896 = vpack.c.b16 %v1832, %v1832
        %v1897 = vpack.c.b16 %v1833, %v1833
        %v1898 = vpack.c.b16 %v1834, %v1834
        %v1899 = vpack.c.b16 %v1835, %v1835
        %v1900 = vpack.c.b16 %v1836, %v1836
        %v1901 = vpack.c.b16 %v1837, %v1837
        %v1902 = vpack.c.b16 %v1838, %v1838
        %v1903 = vpack.c.b16 %v1839, %v1839
        %v1904 = vpack.c.b16 %v1840, %v1840
        %v1905 = vpack.c.b16 %v1841, %v1841
        %v1906 = vpack.c.b16 %v1842, %v1842
        %v1907 = vpack.c.b16 %v1843, %v1843
        %v1908 = vpack.c.b16 %v1844, %v1844
        %v1909 = vpack.c.b16 %v1845, %v1845
        %v1910 = vpack.c.b16 %v1846, %v1846
        %v1911 = vpack.c.b16 %v1847, %v1847
        %v1912 = vpack.c.b16 %v1848, %v1848
        %v1913 = vpack.c.b16 %v1849, %v1849
        %v1914 = vpack.c.b16 %v1850, %v1850
        %v1915 = vpack.c.b16 %v1851, %v1851
        %v1916 = vpack.c.b16 %v1852, %v1852
        %v1917 = vpack.c.b16 %v1853, %v1853
        %v1918 = vpack.c.b16 %v1854, %v1854
        %v1919 = vpack.c.b16 %v1855, %v1855
        %v1920 = vpack.c.b16 %v1856, %v1856
        %v1921 = vpack.c.b16 %v1857, %v1857
        %v1922 = vpack.c.b16 %v1858, %v1858
        %v1923 = vpack.c.b16 %v1859, %v1859
        %v1924 = vpack.c.b16 %v1860, %v1860
        %v1925 = vpack.c.b16 %v1861, %v1861
        %v1926 = vpack.c.b16 %v1862, %v1862
        %v1927 = vpack.c.b16 %v1863, %v1863
        %v1928 = vpack.c.b16 %v1864, %v1864
        %v1929 = vpack.c.b16 %v1865, %v1865
        %v1930 = vpack.c.b16 %v1866, %v1866
        %v1931 = vpack.c.b16 %v1867, %v1867
        %v1932 = vpack.c.b16 %v1868, %v1868
        %v1933 = vpack.c.b16 %v1869, %v1869
        %v1934 = vpack.c.b16 %v1870, %v1870
        %v1935 = vpack.c.b16 %v1871, %v1871
        %v1936 = vpack.c.b16 %v1872, %v1872
        %v1937 = vpack.c.b16 %v1873, %v1873
        %v1938 = vpack.c.b16 %v1874, %v1874
        %v1939 = vpack.c.b16 %v1875, %v1875
        %v1940 = vpack.c.b16 %v1876, %v1876
        %v1941 = vpack.c.b16 %v1877, %v1877
        %v1942 = vpack.c.b16 %v1878, %v1878
        %v1943 = vpack.c.b16 %v1879, %v1879
        %v1944 = vpack.c.b16 %v1880, %v1880
        %v1945 = vpack.c.b16 %v1881, %v1881
        %v1946 = vpack.c.b16 %v1882, %v1882
        %v1947 = vpack.c.b16 %v1883, %v1883
        %v1948 = vpack.c.b16 %v1884, %v1884
        %v1949 = vpack.c.b16 %v1885, %v1885
        %v1950 = vpack.c.b16 %v1886, %v1886
        %v1951 = vpack.c.b16 %v1887, %v1887
        %v1952 = vpack.c.b16 %v1888, %v1888
        %v1953 = vpack.c.b16 %v1889, %v1889
        %v1954 = vpack.c.b16 %v1890, %v1890
        %v1955 = vpack.c.b16 %v1891, %v1891
        %v1956 = vpack.c.b16 %v1892, %v1892
        %v1957 = vpack.c.b16 %v1893, %v1893
        %v1958 = vpack.c.b16 %v1894, %v1894
        %v1959 = vpack.c.b16 %v1895, %v1895
        %vm2024 = vcmask 60416
        %2025 = vst.msk [vmem:[%s380] sm:$0xf] %vm2024, %v1896
        %2026 = vst.msk [vmem:[%s380 + $0x4] sm:$0xf] %vm2024, %v1897
        %2027 = vst.msk [vmem:[%s380 + $0x8] sm:$0xf] %vm2024, %v1898
        %2028 = vst.msk [vmem:[%s380 + $0xc] sm:$0xf] %vm2024, %v1899
        %2029 = vst.msk [vmem:[%s380 + $0x10] sm:$0xf] %vm2024, %v1900
        %2030 = vst.msk [vmem:[%s380 + $0x14] sm:$0xf] %vm2024, %v1901
        %2031 = vst.msk [vmem:[%s380 + $0x18] sm:$0xf] %vm2024, %v1902
        %2032 = vst.msk [vmem:[%s380 + $0x1c] sm:$0xf] %vm2024, %v1903
        %2033 = vst.msk [vmem:[%s380 + $0x20] sm:$0xf] %vm2024, %v1904
        %2034 = vst.msk [vmem:[%s380 + $0x24] sm:$0xf] %vm2024, %v1905
        %2035 = vst.msk [vmem:[%s380 + $0x28] sm:$0xf] %vm2024, %v1906
        %2036 = vst.msk [vmem:[%s380 + $0x2c] sm:$0xf] %vm2024, %v1907
        %2037 = vst.msk [vmem:[%s380 + $0x30] sm:$0xf] %vm2024, %v1908
        %2038 = vst.msk [vmem:[%s380 + $0x34] sm:$0xf] %vm2024, %v1909
        %2039 = vst.msk [vmem:[%s380 + $0x38] sm:$0xf] %vm2024, %v1910
        %2040 = vst.msk [vmem:[%s380 + $0x3c] sm:$0xf] %vm2024, %v1911
        %2041 = vst.msk [vmem:[%s380 + $0x40] sm:$0xf] %vm2024, %v1912
        %2042 = vst.msk [vmem:[%s380 + $0x44] sm:$0xf] %vm2024, %v1913
        %2043 = vst.msk [vmem:[%s380 + $0x48] sm:$0xf] %vm2024, %v1914
        %2044 = vst.msk [vmem:[%s380 + $0x4c] sm:$0xf] %vm2024, %v1915
        %2045 = vst.msk [vmem:[%s380 + $0x50] sm:$0xf] %vm2024, %v1916
        %2046 = vst.msk [vmem:[%s380 + $0x54] sm:$0xf] %vm2024, %v1917
        %2047 = vst.msk [vmem:[%s380 + $0x58] sm:$0xf] %vm2024, %v1918
        %2048 = vst.msk [vmem:[%s380 + $0x5c] sm:$0xf] %vm2024, %v1919
        %2049 = vst.msk [vmem:[%s380 + $0x60] sm:$0xf] %vm2024, %v1920
        %2050 = vst.msk [vmem:[%s380 + $0x64] sm:$0xf] %vm2024, %v1921
        %2051 = vst.msk [vmem:[%s380 + $0x68] sm:$0xf] %vm2024, %v1922
        %2052 = vst.msk [vmem:[%s380 + $0x6c] sm:$0xf] %vm2024, %v1923
        %2053 = vst.msk [vmem:[%s380 + $0x70] sm:$0xf] %vm2024, %v1924
        %2054 = vst.msk [vmem:[%s380 + $0x74] sm:$0xf] %vm2024, %v1925
        %2055 = vst.msk [vmem:[%s380 + $0x78] sm:$0xf] %vm2024, %v1926
        %2056 = vst.msk [vmem:[%s380 + $0x7c] sm:$0xf] %vm2024, %v1927
        %2057 = vst.msk [vmem:[%s380 + $0x80] sm:$0xf] %vm2024, %v1928
        %2058 = vst.msk [vmem:[%s380 + $0x84] sm:$0xf] %vm2024, %v1929
        %2059 = vst.msk [vmem:[%s380 + $0x88] sm:$0xf] %vm2024, %v1930
        %2060 = vst.msk [vmem:[%s380 + $0x8c] sm:$0xf] %vm2024, %v1931
        %2061 = vst.msk [vmem:[%s380 + $0x90] sm:$0xf] %vm2024, %v1932
        %2062 = vst.msk [vmem:[%s380 + $0x94] sm:$0xf] %vm2024, %v1933
        %2063 = vst.msk [vmem:[%s380 + $0x98] sm:$0xf] %vm2024, %v1934
        %2064 = vst.msk [vmem:[%s380 + $0x9c] sm:$0xf] %vm2024, %v1935
        %2065 = vst.msk [vmem:[%s380 + $0xa0] sm:$0xf] %vm2024, %v1936
        %2066 = vst.msk [vmem:[%s380 + $0xa4] sm:$0xf] %vm2024, %v1937
        %2067 = vst.msk [vmem:[%s380 + $0xa8] sm:$0xf] %vm2024, %v1938
        %2068 = vst.msk [vmem:[%s380 + $0xac] sm:$0xf] %vm2024, %v1939
        %2069 = vst.msk [vmem:[%s380 + $0xb0] sm:$0xf] %vm2024, %v1940
        %2070 = vst.msk [vmem:[%s380 + $0xb4] sm:$0xf] %vm2024, %v1941
        %2071 = vst.msk [vmem:[%s380 + $0xb8] sm:$0xf] %vm2024, %v1942
        %2072 = vst.msk [vmem:[%s380 + $0xbc] sm:$0xf] %vm2024, %v1943
        %2073 = vst.msk [vmem:[%s380 + $0xc0] sm:$0xf] %vm2024, %v1944
        %2074 = vst.msk [vmem:[%s380 + $0xc4] sm:$0xf] %vm2024, %v1945
        %2075 = vst.msk [vmem:[%s380 + $0xc8] sm:$0xf] %vm2024, %v1946
        %2076 = vst.msk [vmem:[%s380 + $0xcc] sm:$0xf] %vm2024, %v1947
        %2077 = vst.msk [vmem:[%s380 + $0xd0] sm:$0xf] %vm2024, %v1948
        %2078 = vst.msk [vmem:[%s380 + $0xd4] sm:$0xf] %vm2024, %v1949
        %2079 = vst.msk [vmem:[%s380 + $0xd8] sm:$0xf] %vm2024, %v1950
        %2080 = vst.msk [vmem:[%s380 + $0xdc] sm:$0xf] %vm2024, %v1951
        %2081 = vst.msk [vmem:[%s380 + $0xe0] sm:$0xf] %vm2024, %v1952
        %2082 = vst.msk [vmem:[%s380 + $0xe4] sm:$0xf] %vm2024, %v1953
        %2083 = vst.msk [vmem:[%s380 + $0xe8] sm:$0xf] %vm2024, %v1954
        %2084 = vst.msk [vmem:[%s380 + $0xec] sm:$0xf] %vm2024, %v1955
        %2085 = vst.msk [vmem:[%s380 + $0xf0] sm:$0xf] %vm2024, %v1956
        %2086 = vst.msk [vmem:[%s380 + $0xf4] sm:$0xf] %vm2024, %v1957
        %2087 = vst.msk [vmem:[%s380 + $0xf8] sm:$0xf] %vm2024, %v1958
        %2088 = vst.msk [vmem:[%s380 + $0xfc] sm:$0xf] %vm2024, %v1959
      $region52: #{fused_matmul.1} parent=43 // pred_fallthru
        _
      %s2089 = smul.u32 64, %s22
      %p2090 = scmp.lt.s32.totalorder %s2089, 255
      %s2091 = scalar_select %p2090, %s2089, 255
      %p2092 = scmp.lt.s32.totalorder %s23, 0
      %s2093 = scalar_select %p2092, %s23, 0
      %s2094 = sadd.s32 %s2093, %s2091
      %s2095 = smul.addr %s2094, 4
      %s2096 = scalar_lea.vmem %s6, %s2095
      // Predicated region
      $region53: #{fused_matmul.1} parent=43 // pred_check
        %p2097 = pneg %p216
      $region54: #{fused_matmul.1} parent=43 // pred_check_branch
        %2099 = sbr.rel (%p2097) target = $region56
      $region55: #{fused_matmul.1} parent=43 // pred_region
        %s2100 = smul.u32 64, %s22
      $region56: #{fused_matmul.1} parent=43 // pred_fallthru
        _
    $region44: #{fused_matmul.1} parent=5 // pred_fallthru
      _
    %p2101 = scmp.le.s32.totalorder 2, %s12
    // Predicated region
    $region57: #{fused_matmul.1} parent=5 // pred_check
      %p2102 = pneg %p2101
    $region58: #{fused_matmul.1} parent=5 // pred_check_branch
      %2104 = sbr.rel (%p2102) target = $region60
    $region59: #{fused_matmul.1} parent=5 // pred_region
      %s2105 = ssub.s32 %s12, 2
      // Predicated region
      $region61: #{fused_matmul.1} parent=59 // pred_check
        %p2106 = pneg %p222
      $region62: #{fused_matmul.1} parent=59 // pred_check_branch
        %2108 = sbr.rel (%p2106) target = $region64
      $region63: #{fused_matmul.1} parent=59 // pred_region
        %s2109 = smul.u32 64, %s25
        %p2110 = scmp.lt.s32.totalorder %s2109, 255
        %s2111 = scalar_select %p2110, %s2109, 255
        %p2112 = scmp.lt.s32.totalorder %s26, 0
        %s2113 = scalar_select %p2112, %s26, 0
        %s2114 = sadd.s32 %s2113, %s2111
        %s2115 = smul.addr %s2114, 4
        %s2116 = scalar_lea.vmem %s6, %s2115
      $region64: #{fused_matmul.1} parent=59 // pred_fallthru
        _
    $region60: #{fused_matmul.1} parent=5 // pred_fallthru
      _
  $region6: #{fused_matmul.1} parent=0 // loop_footer
    %s16 = sadd.s32 1, %s12
  $region7: #{fused_matmul.1} parent=0 // loop_footer_branch
    %11 = sbr.rel target = $region3
  $region8: #{fused_matmul.1} parent=0 // loop_exit
    _

</llo_original>
